<compile_context>
chip_gen: v7x
topology: tpu7x:2x2x1
jax: 0.10.0
libtpu: 0.0.40
codegen_flags: <defaults>
</compile_context>

<pallas_src>
import jax
import jax.numpy as jnp
from jax.experimental import pallas as pl
from jax.experimental.pallas import tpu as pltpu

NEG_SLOPE = 0.01      # F.leaky_relu default
OC, OCP = 100, 128    # conv out-channels, lane-padded out-channels


def _leaky(x):
    return jnp.where(x >= 0, x, NEG_SLOPE * x)


# ---------------------------------------------------------------------------
# Fused Pallas kernel: conv(per-row dots) -> leaky -> fc1 -> leaky -> fc2 -> leaky
# ---------------------------------------------------------------------------
def fused_forward_kernel(x_ref, wc_ref, w1_ref, w2_ref, b_ref, o_ref, a0_ref):
    # Per grid step:
    #   x_ref : (tn, dim1*dim2)  f32   flattened input rows
    #   wc_ref: (dim2, 128)      bf16  compact conv weight (out-chan lane-padded)
    #   w1_ref: (dim1*128, 128)  bf16  fc1 weight, rows permuted to h*128+o order
    #   w2_ref: (128, 64)        bf16  fc2 weight
    #   b_ref : (1, 320)         f32   [conv bias (128) | fc1 bias (128) | fc2 bias (64)]
    #   o_ref : (tn, 64)         f32   output tile
    #   a0_ref: (tn, dim1*128)   bf16  VMEM scratch for conv activations (fc1 operand)
    dim2 = wc_ref.shape[0]
    dim1 = a0_ref.shape[1] // OCP

    wcv = wc_ref[...]                 # hoisted: load compact conv weight once
    bc = b_ref[:, 0:OCP]              # (1, 128) conv bias

    # conv1 with a (1, dim2) kernel == one small matmul per spatial row h.
    # Static unroll over dim1; each result is a 128-lane-aligned slice of a0.
    for h in range(dim1):
        xh = x_ref[:, h * dim2:(h + 1) * dim2].astype(jnp.bfloat16)      # (tn, dim2)
        zh = jnp.dot(xh, wcv, preferred_element_type=jnp.float32) + bc   # f32 (tn, 128)
        a0_ref[:, h * OCP:(h + 1) * OCP] = _leaky(zh).astype(a0_ref.dtype)

    # fc1 + leaky_relu (flatten order already baked into w1's row permutation)
    z1 = jnp.dot(a0_ref[...], w1_ref[...],
                 preferred_element_type=jnp.float32) + b_ref[:, OCP:2 * OCP]
    a1 = _leaky(z1)                                                       # (tn, 128) f32

    # TODO(synk): nn.Dropout(0.2) is stochastic in train mode; eval-mode identity here.

    # fc2 + leaky_relu
    z2 = jnp.dot(a1.astype(jnp.bfloat16), w2_ref[...],
                 preferred_element_type=jnp.float32) + b_ref[:, 2 * OCP:2 * OCP + 64]
    o_ref[...] = _leaky(z2).astype(o_ref.dtype)


# ---------------------------------------------------------------------------
# One-time weight preparation (outside the per-call jitted forward)
# ---------------------------------------------------------------------------
def prepare_kernel_params(params, input_shape):
    dim1, dim2 = input_shape
    f32, bf16 = jnp.float32, jnp.bfloat16

    # conv weight (100, 1, 1, dim2) -> (dim2, 100) -> lane-pad to (dim2, 128)
    wc = params["conv_w"].reshape(OC, dim2).T.astype(f32)
    wc = jnp.pad(wc, ((0, 0), (0, OCP - OC)))                      # (dim2, 128)
    bc = jnp.pad(params["conv_b"].astype(f32), (0, OCP - OC))      # (128,)

    # fc1 weight: torch column index o*dim1+h  ->  kernel row index h*128+o
    w1 = params["fc1_w"].T.astype(f32).reshape(OC, dim1, 128)      # (o, h, j)
    w1 = jnp.pad(w1, ((0, OCP - OC), (0, 0), (0, 0)))              # (128, dim1, 128)
    w1 = jnp.transpose(w1, (1, 0, 2)).reshape(dim1 * OCP, 128)     # row h*128+o
    b1 = params["fc1_b"].astype(f32)                                # (128,)

    w2 = params["fc2_w"].T.astype(f32)                              # (128, 64)
    b2 = params["fc2_b"].astype(f32)                                # (64,)

    b_all = jnp.concatenate([bc, b1, b2]).reshape(1, 2 * OCP + 64)  # (1, 320)

    return {"wc": wc.astype(bf16), "w1": w1.astype(bf16),
            "w2": w2.astype(bf16), "b": b_all}


# ---------------------------------------------------------------------------
# Forward pass: a free reshape + one pallas_call (sample-tiled grid, weights resident)
# ---------------------------------------------------------------------------
def cnn_for_fcn_grad_forward(x, kp, *, tile_n=256):
    N = x.shape[0]
    dim1, dim2 = x.shape[2], x.shape[3]
    K = dim1 * dim2
    x_flat = x.reshape(N, K)                       # free view (C=1)

    tn = min(N, tile_n)                            # grid of 1 at small N (no extra overhead)
    n_pad = ((N + tn - 1) // tn) * tn
    if n_pad != N:
        x_flat = jnp.pad(x_flat, ((0, n_pad - N), (0, 0)))

    out = pl.pallas_call(
        fused_forward_kernel,
        out_shape=jax.ShapeDtypeStruct((n_pad, 64), jnp.float32),
        grid=(n_pad // tn,),
        in_specs=[
            pl.BlockSpec((tn, K), lambda i: (i, 0)),                 # input rows: tiled over N
            pl.BlockSpec((dim2, OCP), lambda i: (0, 0)),             # weights: constant blocks,
            pl.BlockSpec((dim1 * OCP, 128), lambda i: (0, 0)),       #   stay VMEM-resident
            pl.BlockSpec((128, 64), lambda i: (0, 0)),
            pl.BlockSpec((1, 2 * OCP + 64), lambda i: (0, 0)),       # fused bias vector
        ],
        out_specs=pl.BlockSpec((tn, 64), lambda i: (i, 0)),
        scratch_shapes=[pltpu.VMEM((tn, dim1 * OCP), jnp.bfloat16)],
        compiler_params=pltpu.CompilerParams(
            dimension_semantics=("parallel",)),                      # v7x: shard tiles over 2 TCs
    )(x_flat, kp["wc"], kp["w1"], kp["w2"], kp["b"])

    return out if n_pad == N else out[:N]


# ---------------------------------------------------------------------------
# Pure-JAX f32 reference (independent path through lax.conv) for verification
# ---------------------------------------------------------------------------
def reference_forward(x, params):
    y = jax.lax.conv_general_dilated(
        x, params["conv_w"], window_strides=(1, 1), padding="VALID",
        dimension_numbers=("NCHW", "OIHW", "NCHW"),
        precision=jax.lax.Precision.HIGHEST)                         # (N, 100, dim1, 1)
    y = _leaky(y + params["conv_b"].reshape(1, OC, 1, 1))
    y = y.reshape(y.shape[0], -1)                                    # index = o*dim1 + h
    y = _leaky(jnp.dot(y, params["fc1_w"].T,
                       precision=jax.lax.Precision.HIGHEST) + params["fc1_b"])
    y = _leaky(jnp.dot(y, params["fc2_w"].T,
                       precision=jax.lax.Precision.HIGHEST) + params["fc2_b"])
    return y


# ---------------------------------------------------------------------------
# Deterministic parameter init (PyTorch-style uniform bounds)
# ---------------------------------------------------------------------------
def init_params(key, input_shape):
    dim1, dim2 = input_shape
    ks = jax.random.split(key, 6)

    def unif(k, shape, fan_in):
        bound = 1.0 / jnp.sqrt(float(fan_in))
        return jax.random.uniform(k, shape, jnp.float32, -bound, bound)

    return {
        "conv_w": unif(ks[0], (OC, 1, 1, dim2), dim2),
        "conv_b": unif(ks[1], (OC,), dim2),
        "fc1_w": unif(ks[2], (128, OC * dim1), OC * dim1),
        "fc1_b": unif(ks[3], (128,), OC * dim1),
        "fc2_w": unif(ks[4], (64, 128), 128),
        "fc2_b": unif(ks[5], (64,), 128),
    }


if __name__ == "__main__":
    input_shape = (16, 16)        # (dim1, dim2)
    batch = 2
    dim1, dim2 = input_shape

    key = jax.random.PRNGKey(0)
    kx, kp = jax.random.split(key)
    x = jax.random.normal(kx, (batch, 1, dim1, dim2), jnp.float32)   # NCHW, C=1
    params = init_params(kp, input_shape)

    kparams = prepare_kernel_params(params, input_shape)             # once, not per call
    fwd = jax.jit(cnn_for_fcn_grad_forward)

    out = jax.block_until_ready(fwd(x, kparams))
    ref = jax.block_until_ready(reference_forward(x, params))

    assert out.shape == (batch, 64), out.shape
    # bf16 MXU operands with f32 accumulation vs f32 HIGHEST reference.
    max_err = float(jnp.max(jnp.abs(out - ref)))
    assert jnp.allclose(out, ref, atol=2e-2, rtol=2e-2), max_err

    print("KERNEL_OK")
</pallas_src>

<mosaic_0001>
module attributes {stable_mosaic.version = 11 : i64} {
  func.func @fused_forward_kernel(%arg0: i32, %arg1: memref<2x256xf32, #tpu.memory_space<vmem>>, %arg2: memref<16x128xbf16, #tpu.memory_space<vmem>>, %arg3: memref<2048x128xbf16, #tpu.memory_space<vmem>>, %arg4: memref<128x64xbf16, #tpu.memory_space<vmem>>, %arg5: memref<1x320xf32, #tpu.memory_space<vmem>>, %arg6: memref<2x64xf32, #tpu.memory_space<vmem>>, %arg7: memref<2x2048xbf16, #tpu.memory_space<vmem>>) attributes {dimension_semantics = [#tpu.dimension_semantics<parallel>], iteration_bounds = array<i64: 1>, scalar_prefetch = 0 : i64, scratch_operands = 1 : i64, tpu.core_type = #tpu.core_type<tc>, window_params = [{transform_indices = @transform_0, window_bounds = array<i64: 2, 256>}, {pipeline_mode = #tpu.pipeline_mode<synchronous>, transform_indices = @transform_1, window_bounds = array<i64: 16, 128>}, {pipeline_mode = #tpu.pipeline_mode<synchronous>, transform_indices = @transform_2, window_bounds = array<i64: 2048, 128>}, {pipeline_mode = #tpu.pipeline_mode<synchronous>, transform_indices = @transform_3, window_bounds = array<i64: 128, 64>}, {pipeline_mode = #tpu.pipeline_mode<synchronous>, transform_indices = @transform_4, window_bounds = array<i64: 1, 320>}, {transform_indices = @transform_5, window_bounds = array<i64: 2, 64>}]} {
    %c0 = arith.constant 0 : index
    %c0_0 = arith.constant 0 : index
    %0 = vector.load %arg2[%c0, %c0_0] : memref<16x128xbf16, #tpu.memory_space<vmem>>, vector<16x128xbf16>
    %c0_1 = arith.constant 0 : index
    %c0_2 = arith.constant 0 : index
    %1 = vector.load %arg5[%c0_1, %c0_2] : memref<1x320xf32, #tpu.memory_space<vmem>>, vector<1x128xf32>
    %c0_3 = arith.constant 0 : index
    %c0_4 = arith.constant 0 : index
    %2 = vector.load %arg1[%c0_3, %c0_4] : memref<2x256xf32, #tpu.memory_space<vmem>>, vector<2x16xf32>
    %3 = arith.truncf %2 : vector<2x16xf32> to vector<2x16xbf16>
    %cst = arith.constant dense<0.000000e+00> : vector<2x128xf32>
    %4 = tpu.matmul %3, %0, %cst {dimension_numbers = #tpu.dot_dimension_numbers<[1], [0], [0], [1], [0, 0, 1, 1], [], []>} : vector<2x16xbf16>, vector<16x128xbf16>, vector<2x128xf32> -> vector<2x128xf32>
    %5 = vector.broadcast %1 : vector<1x128xf32> to vector<2x128xf32>
    %6 = arith.addf %4, %5 : vector<2x128xf32>
    %cst_5 = arith.constant 0.000000e+00 : f32
    %7 = vector.broadcast %cst_5 : f32 to vector<2x128xf32>
    %8 = arith.cmpf oge, %6, %7 : vector<2x128xf32>
    %cst_6 = arith.constant 0.00999999977 : f32
    %9 = vector.broadcast %cst_6 : f32 to vector<2x128xf32>
    %10 = arith.mulf %9, %6 : vector<2x128xf32>
    %11 = arith.select %8, %6, %10 : vector<2x128xi1>, vector<2x128xf32>
    %12 = arith.truncf %11 : vector<2x128xf32> to vector<2x128xbf16>
    %c0_7 = arith.constant 0 : index
    %c0_8 = arith.constant 0 : index
    %13 = vector.load %arg7[%c0_7, %c0_8] : memref<2x2048xbf16, #tpu.memory_space<vmem>>, vector<2x128xbf16>
    tpu.vector_store %arg7[%c0_7, %c0_8], %12 {strides = array<i32>} : memref<2x2048xbf16, #tpu.memory_space<vmem>>, vector<2x128xbf16>,
    %c0_9 = arith.constant 0 : index
    %c16 = arith.constant 16 : index
    %14 = vector.load %arg1[%c0_9, %c16] : memref<2x256xf32, #tpu.memory_space<vmem>>, vector<2x16xf32>
    %15 = arith.truncf %14 : vector<2x16xf32> to vector<2x16xbf16>
    %cst_10 = arith.constant dense<0.000000e+00> : vector<2x128xf32>
    %16 = tpu.matmul %15, %0, %cst_10 {dimension_numbers = #tpu.dot_dimension_numbers<[1], [0], [0], [1], [0, 0, 1, 1], [], []>} : vector<2x16xbf16>, vector<16x128xbf16>, vector<2x128xf32> -> vector<2x128xf32>
    %17 = vector.broadcast %1 : vector<1x128xf32> to vector<2x128xf32>
    %18 = arith.addf %16, %17 : vector<2x128xf32>
    %cst_11 = arith.constant 0.000000e+00 : f32
    %19 = vector.broadcast %cst_11 : f32 to vector<2x128xf32>
    %20 = arith.cmpf oge, %18, %19 : vector<2x128xf32>
    %cst_12 = arith.constant 0.00999999977 : f32
    %21 = vector.broadcast %cst_12 : f32 to vector<2x128xf32>
    %22 = arith.mulf %21, %18 : vector<2x128xf32>
    %23 = arith.select %20, %18, %22 : vector<2x128xi1>, vector<2x128xf32>
    %24 = arith.truncf %23 : vector<2x128xf32> to vector<2x128xbf16>
    %c0_13 = arith.constant 0 : index
    %c128 = arith.constant 128 : index
    %25 = vector.load %arg7[%c0_13, %c128] : memref<2x2048xbf16, #tpu.memory_space<vmem>>, vector<2x128xbf16>
    tpu.vector_store %arg7[%c0_13, %c128], %24 {strides = array<i32>} : memref<2x2048xbf16, #tpu.memory_space<vmem>>, vector<2x128xbf16>,
    %c0_14 = arith.constant 0 : index
    %c32 = arith.constant 32 : index
    %26 = vector.load %arg1[%c0_14, %c32] : memref<2x256xf32, #tpu.memory_space<vmem>>, vector<2x16xf32>
    %27 = arith.truncf %26 : vector<2x16xf32> to vector<2x16xbf16>
    %cst_15 = arith.constant dense<0.000000e+00> : vector<2x128xf32>
    %28 = tpu.matmul %27, %0, %cst_15 {dimension_numbers = #tpu.dot_dimension_numbers<[1], [0], [0], [1], [0, 0, 1, 1], [], []>} : vector<2x16xbf16>, vector<16x128xbf16>, vector<2x128xf32> -> vector<2x128xf32>
    %29 = vector.broadcast %1 : vector<1x128xf32> to vector<2x128xf32>
    %30 = arith.addf %28, %29 : vector<2x128xf32>
    %cst_16 = arith.constant 0.000000e+00 : f32
    %31 = vector.broadcast %cst_16 : f32 to vector<2x128xf32>
    %32 = arith.cmpf oge, %30, %31 : vector<2x128xf32>
    %cst_17 = arith.constant 0.00999999977 : f32
    %33 = vector.broadcast %cst_17 : f32 to vector<2x128xf32>
    %34 = arith.mulf %33, %30 : vector<2x128xf32>
    %35 = arith.select %32, %30, %34 : vector<2x128xi1>, vector<2x128xf32>
    %36 = arith.truncf %35 : vector<2x128xf32> to vector<2x128xbf16>
    %c0_18 = arith.constant 0 : index
    %c256 = arith.constant 256 : index
    %37 = vector.load %arg7[%c0_18, %c256] : memref<2x2048xbf16, #tpu.memory_space<vmem>>, vector<2x128xbf16>
    tpu.vector_store %arg7[%c0_18, %c256], %36 {strides = array<i32>} : memref<2x2048xbf16, #tpu.memory_space<vmem>>, vector<2x128xbf16>,
    %c0_19 = arith.constant 0 : index
    %c48 = arith.constant 48 : index
    %38 = vector.load %arg1[%c0_19, %c48] : memref<2x256xf32, #tpu.memory_space<vmem>>, vector<2x16xf32>
    %39 = arith.truncf %38 : vector<2x16xf32> to vector<2x16xbf16>
    %cst_20 = arith.constant dense<0.000000e+00> : vector<2x128xf32>
    %40 = tpu.matmul %39, %0, %cst_20 {dimension_numbers = #tpu.dot_dimension_numbers<[1], [0], [0], [1], [0, 0, 1, 1], [], []>} : vector<2x16xbf16>, vector<16x128xbf16>, vector<2x128xf32> -> vector<2x128xf32>
    %41 = vector.broadcast %1 : vector<1x128xf32> to vector<2x128xf32>
    %42 = arith.addf %40, %41 : vector<2x128xf32>
    %cst_21 = arith.constant 0.000000e+00 : f32
    %43 = vector.broadcast %cst_21 : f32 to vector<2x128xf32>
    %44 = arith.cmpf oge, %42, %43 : vector<2x128xf32>
    %cst_22 = arith.constant 0.00999999977 : f32
    %45 = vector.broadcast %cst_22 : f32 to vector<2x128xf32>
    %46 = arith.mulf %45, %42 : vector<2x128xf32>
    %47 = arith.select %44, %42, %46 : vector<2x128xi1>, vector<2x128xf32>
    %48 = arith.truncf %47 : vector<2x128xf32> to vector<2x128xbf16>
    %c0_23 = arith.constant 0 : index
    %c384 = arith.constant 384 : index
    %49 = vector.load %arg7[%c0_23, %c384] : memref<2x2048xbf16, #tpu.memory_space<vmem>>, vector<2x128xbf16>
    tpu.vector_store %arg7[%c0_23, %c384], %48 {strides = array<i32>} : memref<2x2048xbf16, #tpu.memory_space<vmem>>, vector<2x128xbf16>,
    %c0_24 = arith.constant 0 : index
    %c64 = arith.constant 64 : index
    %50 = vector.load %arg1[%c0_24, %c64] : memref<2x256xf32, #tpu.memory_space<vmem>>, vector<2x16xf32>
    %51 = arith.truncf %50 : vector<2x16xf32> to vector<2x16xbf16>
    %cst_25 = arith.constant dense<0.000000e+00> : vector<2x128xf32>
    %52 = tpu.matmul %51, %0, %cst_25 {dimension_numbers = #tpu.dot_dimension_numbers<[1], [0], [0], [1], [0, 0, 1, 1], [], []>} : vector<2x16xbf16>, vector<16x128xbf16>, vector<2x128xf32> -> vector<2x128xf32>
    %53 = vector.broadcast %1 : vector<1x128xf32> to vector<2x128xf32>
    %54 = arith.addf %52, %53 : vector<2x128xf32>
    %cst_26 = arith.constant 0.000000e+00 : f32
    %55 = vector.broadcast %cst_26 : f32 to vector<2x128xf32>
    %56 = arith.cmpf oge, %54, %55 : vector<2x128xf32>
    %cst_27 = arith.constant 0.00999999977 : f32
    %57 = vector.broadcast %cst_27 : f32 to vector<2x128xf32>
    %58 = arith.mulf %57, %54 : vector<2x128xf32>
    %59 = arith.select %56, %54, %58 : vector<2x128xi1>, vector<2x128xf32>
    %60 = arith.truncf %59 : vector<2x128xf32> to vector<2x128xbf16>
    %c0_28 = arith.constant 0 : index
    %c512 = arith.constant 512 : index
    %61 = vector.load %arg7[%c0_28, %c512] : memref<2x2048xbf16, #tpu.memory_space<vmem>>, vector<2x128xbf16>
    tpu.vector_store %arg7[%c0_28, %c512], %60 {strides = array<i32>} : memref<2x2048xbf16, #tpu.memory_space<vmem>>, vector<2x128xbf16>,
    %c0_29 = arith.constant 0 : index
    %c80 = arith.constant 80 : index
    %62 = vector.load %arg1[%c0_29, %c80] : memref<2x256xf32, #tpu.memory_space<vmem>>, vector<2x16xf32>
    %63 = arith.truncf %62 : vector<2x16xf32> to vector<2x16xbf16>
    %cst_30 = arith.constant dense<0.000000e+00> : vector<2x128xf32>
    %64 = tpu.matmul %63, %0, %cst_30 {dimension_numbers = #tpu.dot_dimension_numbers<[1], [0], [0], [1], [0, 0, 1, 1], [], []>} : vector<2x16xbf16>, vector<16x128xbf16>, vector<2x128xf32> -> vector<2x128xf32>
    %65 = vector.broadcast %1 : vector<1x128xf32> to vector<2x128xf32>
    %66 = arith.addf %64, %65 : vector<2x128xf32>
    %cst_31 = arith.constant 0.000000e+00 : f32
    %67 = vector.broadcast %cst_31 : f32 to vector<2x128xf32>
    %68 = arith.cmpf oge, %66, %67 : vector<2x128xf32>
    %cst_32 = arith.constant 0.00999999977 : f32
    %69 = vector.broadcast %cst_32 : f32 to vector<2x128xf32>
    %70 = arith.mulf %69, %66 : vector<2x128xf32>
    %71 = arith.select %68, %66, %70 : vector<2x128xi1>, vector<2x128xf32>
    %72 = arith.truncf %71 : vector<2x128xf32> to vector<2x128xbf16>
    %c0_33 = arith.constant 0 : index
    %c640 = arith.constant 640 : index
    %73 = vector.load %arg7[%c0_33, %c640] : memref<2x2048xbf16, #tpu.memory_space<vmem>>, vector<2x128xbf16>
    tpu.vector_store %arg7[%c0_33, %c640], %72 {strides = array<i32>} : memref<2x2048xbf16, #tpu.memory_space<vmem>>, vector<2x128xbf16>,
    %c0_34 = arith.constant 0 : index
    %c96 = arith.constant 96 : index
    %74 = vector.load %arg1[%c0_34, %c96] : memref<2x256xf32, #tpu.memory_space<vmem>>, vector<2x16xf32>
    %75 = arith.truncf %74 : vector<2x16xf32> to vector<2x16xbf16>
    %cst_35 = arith.constant dense<0.000000e+00> : vector<2x128xf32>
    %76 = tpu.matmul %75, %0, %cst_35 {dimension_numbers = #tpu.dot_dimension_numbers<[1], [0], [0], [1], [0, 0, 1, 1], [], []>} : vector<2x16xbf16>, vector<16x128xbf16>, vector<2x128xf32> -> vector<2x128xf32>
    %77 = vector.broadcast %1 : vector<1x128xf32> to vector<2x128xf32>
    %78 = arith.addf %76, %77 : vector<2x128xf32>
    %cst_36 = arith.constant 0.000000e+00 : f32
    %79 = vector.broadcast %cst_36 : f32 to vector<2x128xf32>
    %80 = arith.cmpf oge, %78, %79 : vector<2x128xf32>
    %cst_37 = arith.constant 0.00999999977 : f32
    %81 = vector.broadcast %cst_37 : f32 to vector<2x128xf32>
    %82 = arith.mulf %81, %78 : vector<2x128xf32>
    %83 = arith.select %80, %78, %82 : vector<2x128xi1>, vector<2x128xf32>
    %84 = arith.truncf %83 : vector<2x128xf32> to vector<2x128xbf16>
    %c0_38 = arith.constant 0 : index
    %c768 = arith.constant 768 : index
    %85 = vector.load %arg7[%c0_38, %c768] : memref<2x2048xbf16, #tpu.memory_space<vmem>>, vector<2x128xbf16>
    tpu.vector_store %arg7[%c0_38, %c768], %84 {strides = array<i32>} : memref<2x2048xbf16, #tpu.memory_space<vmem>>, vector<2x128xbf16>,
    %c0_39 = arith.constant 0 : index
    %c112 = arith.constant 112 : index
    %86 = vector.load %arg1[%c0_39, %c112] : memref<2x256xf32, #tpu.memory_space<vmem>>, vector<2x16xf32>
    %87 = arith.truncf %86 : vector<2x16xf32> to vector<2x16xbf16>
    %cst_40 = arith.constant dense<0.000000e+00> : vector<2x128xf32>
    %88 = tpu.matmul %87, %0, %cst_40 {dimension_numbers = #tpu.dot_dimension_numbers<[1], [0], [0], [1], [0, 0, 1, 1], [], []>} : vector<2x16xbf16>, vector<16x128xbf16>, vector<2x128xf32> -> vector<2x128xf32>
    %89 = vector.broadcast %1 : vector<1x128xf32> to vector<2x128xf32>
    %90 = arith.addf %88, %89 : vector<2x128xf32>
    %cst_41 = arith.constant 0.000000e+00 : f32
    %91 = vector.broadcast %cst_41 : f32 to vector<2x128xf32>
    %92 = arith.cmpf oge, %90, %91 : vector<2x128xf32>
    %cst_42 = arith.constant 0.00999999977 : f32
    %93 = vector.broadcast %cst_42 : f32 to vector<2x128xf32>
    %94 = arith.mulf %93, %90 : vector<2x128xf32>
    %95 = arith.select %92, %90, %94 : vector<2x128xi1>, vector<2x128xf32>
    %96 = arith.truncf %95 : vector<2x128xf32> to vector<2x128xbf16>
    %c0_43 = arith.constant 0 : index
    %c896 = arith.constant 896 : index
    %97 = vector.load %arg7[%c0_43, %c896] : memref<2x2048xbf16, #tpu.memory_space<vmem>>, vector<2x128xbf16>
    tpu.vector_store %arg7[%c0_43, %c896], %96 {strides = array<i32>} : memref<2x2048xbf16, #tpu.memory_space<vmem>>, vector<2x128xbf16>,
    %c0_44 = arith.constant 0 : index
    %c128_45 = arith.constant 128 : index
    %98 = vector.load %arg1[%c0_44, %c128_45] : memref<2x256xf32, #tpu.memory_space<vmem>>, vector<2x16xf32>
    %99 = arith.truncf %98 : vector<2x16xf32> to vector<2x16xbf16>
    %cst_46 = arith.constant dense<0.000000e+00> : vector<2x128xf32>
    %100 = tpu.matmul %99, %0, %cst_46 {dimension_numbers = #tpu.dot_dimension_numbers<[1], [0], [0], [1], [0, 0, 1, 1], [], []>} : vector<2x16xbf16>, vector<16x128xbf16>, vector<2x128xf32> -> vector<2x128xf32>
    %101 = vector.broadcast %1 : vector<1x128xf32> to vector<2x128xf32>
    %102 = arith.addf %100, %101 : vector<2x128xf32>
    %cst_47 = arith.constant 0.000000e+00 : f32
    %103 = vector.broadcast %cst_47 : f32 to vector<2x128xf32>
    %104 = arith.cmpf oge, %102, %103 : vector<2x128xf32>
    %cst_48 = arith.constant 0.00999999977 : f32
    %105 = vector.broadcast %cst_48 : f32 to vector<2x128xf32>
    %106 = arith.mulf %105, %102 : vector<2x128xf32>
    %107 = arith.select %104, %102, %106 : vector<2x128xi1>, vector<2x128xf32>
    %108 = arith.truncf %107 : vector<2x128xf32> to vector<2x128xbf16>
    %c0_49 = arith.constant 0 : index
    %c1024 = arith.constant 1024 : index
    %109 = vector.load %arg7[%c0_49, %c1024] : memref<2x2048xbf16, #tpu.memory_space<vmem>>, vector<2x128xbf16>
    tpu.vector_store %arg7[%c0_49, %c1024], %108 {strides = array<i32>} : memref<2x2048xbf16, #tpu.memory_space<vmem>>, vector<2x128xbf16>,
    %c0_50 = arith.constant 0 : index
    %c144 = arith.constant 144 : index
    %110 = vector.load %arg1[%c0_50, %c144] : memref<2x256xf32, #tpu.memory_space<vmem>>, vector<2x16xf32>
    %111 = arith.truncf %110 : vector<2x16xf32> to vector<2x16xbf16>
    %cst_51 = arith.constant dense<0.000000e+00> : vector<2x128xf32>
    %112 = tpu.matmul %111, %0, %cst_51 {dimension_numbers = #tpu.dot_dimension_numbers<[1], [0], [0], [1], [0, 0, 1, 1], [], []>} : vector<2x16xbf16>, vector<16x128xbf16>, vector<2x128xf32> -> vector<2x128xf32>
    %113 = vector.broadcast %1 : vector<1x128xf32> to vector<2x128xf32>
    %114 = arith.addf %112, %113 : vector<2x128xf32>
    %cst_52 = arith.constant 0.000000e+00 : f32
    %115 = vector.broadcast %cst_52 : f32 to vector<2x128xf32>
    %116 = arith.cmpf oge, %114, %115 : vector<2x128xf32>
    %cst_53 = arith.constant 0.00999999977 : f32
    %117 = vector.broadcast %cst_53 : f32 to vector<2x128xf32>
    %118 = arith.mulf %117, %114 : vector<2x128xf32>
    %119 = arith.select %116, %114, %118 : vector<2x128xi1>, vector<2x128xf32>
    %120 = arith.truncf %119 : vector<2x128xf32> to vector<2x128xbf16>
    %c0_54 = arith.constant 0 : index
    %c1152 = arith.constant 1152 : index
    %121 = vector.load %arg7[%c0_54, %c1152] : memref<2x2048xbf16, #tpu.memory_space<vmem>>, vector<2x128xbf16>
    tpu.vector_store %arg7[%c0_54, %c1152], %120 {strides = array<i32>} : memref<2x2048xbf16, #tpu.memory_space<vmem>>, vector<2x128xbf16>,
    %c0_55 = arith.constant 0 : index
    %c160 = arith.constant 160 : index
    %122 = vector.load %arg1[%c0_55, %c160] : memref<2x256xf32, #tpu.memory_space<vmem>>, vector<2x16xf32>
    %123 = arith.truncf %122 : vector<2x16xf32> to vector<2x16xbf16>
    %cst_56 = arith.constant dense<0.000000e+00> : vector<2x128xf32>
    %124 = tpu.matmul %123, %0, %cst_56 {dimension_numbers = #tpu.dot_dimension_numbers<[1], [0], [0], [1], [0, 0, 1, 1], [], []>} : vector<2x16xbf16>, vector<16x128xbf16>, vector<2x128xf32> -> vector<2x128xf32>
    %125 = vector.broadcast %1 : vector<1x128xf32> to vector<2x128xf32>
    %126 = arith.addf %124, %125 : vector<2x128xf32>
    %cst_57 = arith.constant 0.000000e+00 : f32
    %127 = vector.broadcast %cst_57 : f32 to vector<2x128xf32>
    %128 = arith.cmpf oge, %126, %127 : vector<2x128xf32>
    %cst_58 = arith.constant 0.00999999977 : f32
    %129 = vector.broadcast %cst_58 : f32 to vector<2x128xf32>
    %130 = arith.mulf %129, %126 : vector<2x128xf32>
    %131 = arith.select %128, %126, %130 : vector<2x128xi1>, vector<2x128xf32>
    %132 = arith.truncf %131 : vector<2x128xf32> to vector<2x128xbf16>
    %c0_59 = arith.constant 0 : index
    %c1280 = arith.constant 1280 : index
    %133 = vector.load %arg7[%c0_59, %c1280] : memref<2x2048xbf16, #tpu.memory_space<vmem>>, vector<2x128xbf16>
    tpu.vector_store %arg7[%c0_59, %c1280], %132 {strides = array<i32>} : memref<2x2048xbf16, #tpu.memory_space<vmem>>, vector<2x128xbf16>,
    %c0_60 = arith.constant 0 : index
    %c176 = arith.constant 176 : index
    %134 = vector.load %arg1[%c0_60, %c176] : memref<2x256xf32, #tpu.memory_space<vmem>>, vector<2x16xf32>
    %135 = arith.truncf %134 : vector<2x16xf32> to vector<2x16xbf16>
    %cst_61 = arith.constant dense<0.000000e+00> : vector<2x128xf32>
    %136 = tpu.matmul %135, %0, %cst_61 {dimension_numbers = #tpu.dot_dimension_numbers<[1], [0], [0], [1], [0, 0, 1, 1], [], []>} : vector<2x16xbf16>, vector<16x128xbf16>, vector<2x128xf32> -> vector<2x128xf32>
    %137 = vector.broadcast %1 : vector<1x128xf32> to vector<2x128xf32>
    %138 = arith.addf %136, %137 : vector<2x128xf32>
    %cst_62 = arith.constant 0.000000e+00 : f32
    %139 = vector.broadcast %cst_62 : f32 to vector<2x128xf32>
    %140 = arith.cmpf oge, %138, %139 : vector<2x128xf32>
    %cst_63 = arith.constant 0.00999999977 : f32
    %141 = vector.broadcast %cst_63 : f32 to vector<2x128xf32>
    %142 = arith.mulf %141, %138 : vector<2x128xf32>
    %143 = arith.select %140, %138, %142 : vector<2x128xi1>, vector<2x128xf32>
    %144 = arith.truncf %143 : vector<2x128xf32> to vector<2x128xbf16>
    %c0_64 = arith.constant 0 : index
    %c1408 = arith.constant 1408 : index
    %145 = vector.load %arg7[%c0_64, %c1408] : memref<2x2048xbf16, #tpu.memory_space<vmem>>, vector<2x128xbf16>
    tpu.vector_store %arg7[%c0_64, %c1408], %144 {strides = array<i32>} : memref<2x2048xbf16, #tpu.memory_space<vmem>>, vector<2x128xbf16>,
    %c0_65 = arith.constant 0 : index
    %c192 = arith.constant 192 : index
    %146 = vector.load %arg1[%c0_65, %c192] : memref<2x256xf32, #tpu.memory_space<vmem>>, vector<2x16xf32>
    %147 = arith.truncf %146 : vector<2x16xf32> to vector<2x16xbf16>
    %cst_66 = arith.constant dense<0.000000e+00> : vector<2x128xf32>
    %148 = tpu.matmul %147, %0, %cst_66 {dimension_numbers = #tpu.dot_dimension_numbers<[1], [0], [0], [1], [0, 0, 1, 1], [], []>} : vector<2x16xbf16>, vector<16x128xbf16>, vector<2x128xf32> -> vector<2x128xf32>
    %149 = vector.broadcast %1 : vector<1x128xf32> to vector<2x128xf32>
    %150 = arith.addf %148, %149 : vector<2x128xf32>
    %cst_67 = arith.constant 0.000000e+00 : f32
    %151 = vector.broadcast %cst_67 : f32 to vector<2x128xf32>
    %152 = arith.cmpf oge, %150, %151 : vector<2x128xf32>
    %cst_68 = arith.constant 0.00999999977 : f32
    %153 = vector.broadcast %cst_68 : f32 to vector<2x128xf32>
    %154 = arith.mulf %153, %150 : vector<2x128xf32>
    %155 = arith.select %152, %150, %154 : vector<2x128xi1>, vector<2x128xf32>
    %156 = arith.truncf %155 : vector<2x128xf32> to vector<2x128xbf16>
    %c0_69 = arith.constant 0 : index
    %c1536 = arith.constant 1536 : index
    %157 = vector.load %arg7[%c0_69, %c1536] : memref<2x2048xbf16, #tpu.memory_space<vmem>>, vector<2x128xbf16>
    tpu.vector_store %arg7[%c0_69, %c1536], %156 {strides = array<i32>} : memref<2x2048xbf16, #tpu.memory_space<vmem>>, vector<2x128xbf16>,
    %c0_70 = arith.constant 0 : index
    %c208 = arith.constant 208 : index
    %158 = vector.load %arg1[%c0_70, %c208] : memref<2x256xf32, #tpu.memory_space<vmem>>, vector<2x16xf32>
    %159 = arith.truncf %158 : vector<2x16xf32> to vector<2x16xbf16>
    %cst_71 = arith.constant dense<0.000000e+00> : vector<2x128xf32>
    %160 = tpu.matmul %159, %0, %cst_71 {dimension_numbers = #tpu.dot_dimension_numbers<[1], [0], [0], [1], [0, 0, 1, 1], [], []>} : vector<2x16xbf16>, vector<16x128xbf16>, vector<2x128xf32> -> vector<2x128xf32>
    %161 = vector.broadcast %1 : vector<1x128xf32> to vector<2x128xf32>
    %162 = arith.addf %160, %161 : vector<2x128xf32>
    %cst_72 = arith.constant 0.000000e+00 : f32
    %163 = vector.broadcast %cst_72 : f32 to vector<2x128xf32>
    %164 = arith.cmpf oge, %162, %163 : vector<2x128xf32>
    %cst_73 = arith.constant 0.00999999977 : f32
    %165 = vector.broadcast %cst_73 : f32 to vector<2x128xf32>
    %166 = arith.mulf %165, %162 : vector<2x128xf32>
    %167 = arith.select %164, %162, %166 : vector<2x128xi1>, vector<2x128xf32>
    %168 = arith.truncf %167 : vector<2x128xf32> to vector<2x128xbf16>
    %c0_74 = arith.constant 0 : index
    %c1664 = arith.constant 1664 : index
    %169 = vector.load %arg7[%c0_74, %c1664] : memref<2x2048xbf16, #tpu.memory_space<vmem>>, vector<2x128xbf16>
    tpu.vector_store %arg7[%c0_74, %c1664], %168 {strides = array<i32>} : memref<2x2048xbf16, #tpu.memory_space<vmem>>, vector<2x128xbf16>,
    %c0_75 = arith.constant 0 : index
    %c224 = arith.constant 224 : index
    %170 = vector.load %arg1[%c0_75, %c224] : memref<2x256xf32, #tpu.memory_space<vmem>>, vector<2x16xf32>
    %171 = arith.truncf %170 : vector<2x16xf32> to vector<2x16xbf16>
    %cst_76 = arith.constant dense<0.000000e+00> : vector<2x128xf32>
    %172 = tpu.matmul %171, %0, %cst_76 {dimension_numbers = #tpu.dot_dimension_numbers<[1], [0], [0], [1], [0, 0, 1, 1], [], []>} : vector<2x16xbf16>, vector<16x128xbf16>, vector<2x128xf32> -> vector<2x128xf32>
    %173 = vector.broadcast %1 : vector<1x128xf32> to vector<2x128xf32>
    %174 = arith.addf %172, %173 : vector<2x128xf32>
    %cst_77 = arith.constant 0.000000e+00 : f32
    %175 = vector.broadcast %cst_77 : f32 to vector<2x128xf32>
    %176 = arith.cmpf oge, %174, %175 : vector<2x128xf32>
    %cst_78 = arith.constant 0.00999999977 : f32
    %177 = vector.broadcast %cst_78 : f32 to vector<2x128xf32>
    %178 = arith.mulf %177, %174 : vector<2x128xf32>
    %179 = arith.select %176, %174, %178 : vector<2x128xi1>, vector<2x128xf32>
    %180 = arith.truncf %179 : vector<2x128xf32> to vector<2x128xbf16>
    %c0_79 = arith.constant 0 : index
    %c1792 = arith.constant 1792 : index
    %181 = vector.load %arg7[%c0_79, %c1792] : memref<2x2048xbf16, #tpu.memory_space<vmem>>, vector<2x128xbf16>
    tpu.vector_store %arg7[%c0_79, %c1792], %180 {strides = array<i32>} : memref<2x2048xbf16, #tpu.memory_space<vmem>>, vector<2x128xbf16>,
    %c0_80 = arith.constant 0 : index
    %c240 = arith.constant 240 : index
    %182 = vector.load %arg1[%c0_80, %c240] : memref<2x256xf32, #tpu.memory_space<vmem>>, vector<2x16xf32>
    %183 = arith.truncf %182 : vector<2x16xf32> to vector<2x16xbf16>
    %cst_81 = arith.constant dense<0.000000e+00> : vector<2x128xf32>
    %184 = tpu.matmul %183, %0, %cst_81 {dimension_numbers = #tpu.dot_dimension_numbers<[1], [0], [0], [1], [0, 0, 1, 1], [], []>} : vector<2x16xbf16>, vector<16x128xbf16>, vector<2x128xf32> -> vector<2x128xf32>
    %185 = vector.broadcast %1 : vector<1x128xf32> to vector<2x128xf32>
    %186 = arith.addf %184, %185 : vector<2x128xf32>
    %cst_82 = arith.constant 0.000000e+00 : f32
    %187 = vector.broadcast %cst_82 : f32 to vector<2x128xf32>
    %188 = arith.cmpf oge, %186, %187 : vector<2x128xf32>
    %cst_83 = arith.constant 0.00999999977 : f32
    %189 = vector.broadcast %cst_83 : f32 to vector<2x128xf32>
    %190 = arith.mulf %189, %186 : vector<2x128xf32>
    %191 = arith.select %188, %186, %190 : vector<2x128xi1>, vector<2x128xf32>
    %192 = arith.truncf %191 : vector<2x128xf32> to vector<2x128xbf16>
    %c0_84 = arith.constant 0 : index
    %c1920 = arith.constant 1920 : index
    %193 = vector.load %arg7[%c0_84, %c1920] : memref<2x2048xbf16, #tpu.memory_space<vmem>>, vector<2x128xbf16>
    tpu.vector_store %arg7[%c0_84, %c1920], %192 {strides = array<i32>} : memref<2x2048xbf16, #tpu.memory_space<vmem>>, vector<2x128xbf16>,
    %c0_85 = arith.constant 0 : index
    %c0_86 = arith.constant 0 : index
    %194 = vector.load %arg7[%c0_85, %c0_86] : memref<2x2048xbf16, #tpu.memory_space<vmem>>, vector<2x2048xbf16>
    %c0_87 = arith.constant 0 : index
    %c0_88 = arith.constant 0 : index
    %195 = vector.load %arg3[%c0_87, %c0_88] : memref<2048x128xbf16, #tpu.memory_space<vmem>>, vector<2048x128xbf16>
    %cst_89 = arith.constant dense<0.000000e+00> : vector<2x128xf32>
    %196 = tpu.matmul %194, %195, %cst_89 {dimension_numbers = #tpu.dot_dimension_numbers<[1], [0], [0], [1], [0, 0, 1, 1], [], []>} : vector<2x2048xbf16>, vector<2048x128xbf16>, vector<2x128xf32> -> vector<2x128xf32>
    %c0_90 = arith.constant 0 : index
    %c128_91 = arith.constant 128 : index
    %197 = vector.load %arg5[%c0_90, %c128_91] : memref<1x320xf32, #tpu.memory_space<vmem>>, vector<1x128xf32>
    %198 = vector.broadcast %197 : vector<1x128xf32> to vector<2x128xf32>
    %199 = arith.addf %196, %198 : vector<2x128xf32>
    %cst_92 = arith.constant 0.000000e+00 : f32
    %200 = vector.broadcast %cst_92 : f32 to vector<2x128xf32>
    %201 = arith.cmpf oge, %199, %200 : vector<2x128xf32>
    %cst_93 = arith.constant 0.00999999977 : f32
    %202 = vector.broadcast %cst_93 : f32 to vector<2x128xf32>
    %203 = arith.mulf %202, %199 : vector<2x128xf32>
    %204 = arith.select %201, %199, %203 : vector<2x128xi1>, vector<2x128xf32>
    %205 = arith.truncf %204 : vector<2x128xf32> to vector<2x128xbf16>
    %c0_94 = arith.constant 0 : index
    %c0_95 = arith.constant 0 : index
    %206 = vector.load %arg4[%c0_94, %c0_95] : memref<128x64xbf16, #tpu.memory_space<vmem>>, vector<128x64xbf16>
    %cst_96 = arith.constant dense<0.000000e+00> : vector<2x64xf32>
    %207 = tpu.matmul %205, %206, %cst_96 {dimension_numbers = #tpu.dot_dimension_numbers<[1], [0], [0], [1], [0, 0, 1, 1], [], []>} : vector<2x128xbf16>, vector<128x64xbf16>, vector<2x64xf32> -> vector<2x64xf32>
    %c0_97 = arith.constant 0 : index
    %c256_98 = arith.constant 256 : index
    %208 = vector.load %arg5[%c0_97, %c256_98] : memref<1x320xf32, #tpu.memory_space<vmem>>, vector<1x64xf32>
    %209 = vector.broadcast %208 : vector<1x64xf32> to vector<2x64xf32>
    %210 = arith.addf %207, %209 : vector<2x64xf32>
    %cst_99 = arith.constant 0.000000e+00 : f32
    %211 = vector.broadcast %cst_99 : f32 to vector<2x64xf32>
    %212 = arith.cmpf oge, %210, %211 : vector<2x64xf32>
    %cst_100 = arith.constant 0.00999999977 : f32
    %213 = vector.broadcast %cst_100 : f32 to vector<2x64xf32>
    %214 = arith.mulf %213, %210 : vector<2x64xf32>
    %215 = arith.select %212, %210, %214 : vector<2x64xi1>, vector<2x64xf32>
    %c0_101 = arith.constant 0 : index
    %c0_102 = arith.constant 0 : index
    %216 = vector.load %arg6[%c0_101, %c0_102] : memref<2x64xf32, #tpu.memory_space<vmem>>, vector<2x64xf32>
    tpu.vector_store %arg6[%c0_101, %c0_102], %215 {strides = array<i32>} : memref<2x64xf32, #tpu.memory_space<vmem>>, vector<2x64xf32>,
    return
  }
  func.func @transform_0(%arg0: i32) -> (i32, i32) {
    %c0_i32 = arith.constant 0 : i32
    %c0_i32_0 = arith.constant 0 : i32
    return %arg0, %c0_i32 : i32, i32
  }
  func.func @transform_1(%arg0: i32) -> (i32, i32) {
    %c0_i32 = arith.constant 0 : i32
    %c0_i32_0 = arith.constant 0 : i32
    %c0_i32_1 = arith.constant 0 : i32
    return %c0_i32, %c0_i32_0 : i32, i32
  }
  func.func @transform_2(%arg0: i32) -> (i32, i32) {
    %c0_i32 = arith.constant 0 : i32
    %c0_i32_0 = arith.constant 0 : i32
    %c0_i32_1 = arith.constant 0 : i32
    return %c0_i32, %c0_i32_0 : i32, i32
  }
  func.func @transform_3(%arg0: i32) -> (i32, i32) {
    %c0_i32 = arith.constant 0 : i32
    %c0_i32_0 = arith.constant 0 : i32
    %c0_i32_1 = arith.constant 0 : i32
    return %c0_i32, %c0_i32_0 : i32, i32
  }
  func.func @transform_4(%arg0: i32) -> (i32, i32) {
    %c0_i32 = arith.constant 0 : i32
    %c0_i32_0 = arith.constant 0 : i32
    %c0_i32_1 = arith.constant 0 : i32
    return %c0_i32, %c0_i32_0 : i32, i32
  }
  func.func @transform_5(%arg0: i32) -> (i32, i32) {
    %c0_i32 = arith.constant 0 : i32
    %c0_i32_0 = arith.constant 0 : i32
    return %arg0, %c0_i32 : i32, i32
  }
}

</mosaic_0001>

<llo_original>
// kernel: cnn_for_fcn_grad_forward.1
$region0: #{cnn_for_fcn_grad_forward.1}
  #allocation0 [shape = 'u32[]', space=smem, size = 0x4, offset = 0x4, fixed_abs, tag = 'smem constant byte address 0x4 - core index']
  #allocation1 [shape = 'u32[144,128]{1,0:T(1,128)}', space=vmem, size = 0x12000, scoped, tag = 'internal scratch']
  #allocation2 [shape = 'bf16[2,2048]{1,0:T(2,128)(2,1)}', space=vmem, size = 0x2000, scoped, tag = 'scratch operand']
  %s0 = inlined_call_operand.vmem [shape: f32[2,256], index: 0, kind: input, shape index: {}]
  %s1 = inlined_call_operand.vmem [shape: bf16[16,128], index: 1, kind: input, shape index: {}]
  %s2 = inlined_call_operand.hbm [shape: bf16[2048,128], index: 2, kind: input, shape index: {}]
  %s3 = inlined_call_operand.vmem [shape: bf16[128,64], index: 3, kind: input, shape index: {}]
  %s4 = inlined_call_operand.vmem [shape: f32[1,320], index: 4, kind: input, shape index: {}]
  %s5 = inlined_call_operand.hbm [shape: f32[2,64], index: 5, kind: output, shape index: {}]
  %s6 = sld [smem:[#allocation0]]
  $region34: #{cnn_for_fcn_grad_forward.1} parent=0
    _
  %s8 = ssub.s32 1, %s6
  %s9 = scalar_select 0, %s8, %s6
  $region1: #{cnn_for_fcn_grad_forward.1} parent=0
    #allocation3 [shape = 'u8[524288]{0}', space=vmem, size = 0x80000, scoped, tag = 'input window, operand 2, single buffered']
    #allocation4 [shape = 's32[1]{0}', space=sflag, size = 0x4, scoped, tag = 'scoped memory for cnn_for_fcn_grad_forward.1']
    #allocation5 [shape = 's32[1]{0}', space=sflag, size = 0x4, scoped, tag = 'scoped memory for cnn_for_fcn_grad_forward.1']
    #allocation6 [shape = 'u8[1024]{0}', space=vmem, size = 0x400, scoped, tag = 'output window, operand 0, single buffered']
    %10 = vsyncpa [#allocation4], 0
    %11 = vsyncpa [#allocation5], 0
    // Predicated region
    $region2: #{cnn_for_fcn_grad_forward.1} parent=1 // pred_check
      _
    $region3: #{cnn_for_fcn_grad_forward.1} parent=1 // pred_check_branch
      %13 = sbr.rel (0) target = $region5
    $region4: #{cnn_for_fcn_grad_forward.1} parent=1 // pred_region
      _
    $region5: #{cnn_for_fcn_grad_forward.1} parent=1 // pred_fallthru
      _
    // Predicated region
    $region6: #{cnn_for_fcn_grad_forward.1} parent=1 // pred_check
      _
    $region7: #{cnn_for_fcn_grad_forward.1} parent=1 // pred_check_branch
      %15 = sbr.rel (0) target = $region9
    $region8: #{cnn_for_fcn_grad_forward.1} parent=1 // pred_region
      _
    $region9: #{cnn_for_fcn_grad_forward.1} parent=1 // pred_fallthru
      _
    // Predicated region
    $region10: #{cnn_for_fcn_grad_forward.1} parent=1 // pred_check
      _
    $region11: #{cnn_for_fcn_grad_forward.1} parent=1 // pred_check_branch
      %17 = sbr.rel (0) target = $region13
    $region12: #{cnn_for_fcn_grad_forward.1} parent=1 // pred_region
      %s19 = ssub.s32 16384, 16384
      %20 = vsyncadd [#allocation4], %s19
      %s21 = sshll.u32 [#allocation3], 4
      %s22 = int_to_ptr.vmem [resolvable:$true] %s21
      %27 = dma.hbm_to_vmem [thread:$0]  %s2, 16384, %s22, [#allocation4], 64, 64, 4
    $region13: #{cnn_for_fcn_grad_forward.1} parent=1 // pred_fallthru
      _
    // Predicated region
    $region14: #{cnn_for_fcn_grad_forward.1} parent=1 // pred_check
      _
    $region15: #{cnn_for_fcn_grad_forward.1} parent=1 // pred_check_branch
      %29 = sbr.rel (0) target = $region17
    $region16: #{cnn_for_fcn_grad_forward.1} parent=1 // pred_region
      _
    $region17: #{cnn_for_fcn_grad_forward.1} parent=1 // pred_fallthru
      _
    // Predicated region
    $region18: #{cnn_for_fcn_grad_forward.1} parent=1 // pred_check
      _
    $region19: #{cnn_for_fcn_grad_forward.1} parent=1 // pred_check_branch
      %31 = sbr.rel (0) target = $region21
    $region20: #{cnn_for_fcn_grad_forward.1} parent=1 // pred_region
      _
    $region21: #{cnn_for_fcn_grad_forward.1} parent=1 // pred_fallthru
      _
    // Predicated region
    $region22: #{cnn_for_fcn_grad_forward.1} parent=1 // pred_check
      _
    $region23: #{cnn_for_fcn_grad_forward.1} parent=1 // pred_check_branch
      %33 = sbr.rel (0) target = $region25
    $region24: #{cnn_for_fcn_grad_forward.1} parent=1 // pred_region
      %34 = dma.done [#allocation4], 16384
    $region25: #{cnn_for_fcn_grad_forward.1} parent=1 // pred_fallthru
      _
    %v36 = vld [vmem:[%s1] sm:$0xf]
    %v37 = vld [vmem:[%s1 + $0x4] sm:$0xf]
    %v38 = vld [vmem:[%s4] sm:$0x1]
    %v39 = vld [vmem:[%s0] sm:$0x3]
    %v40 = vpack.c.bf16 %v39, %v39
    %v42 = vlaneseq
    %v43 = vshrl.u32 %v42, 7
    %v44 = vsub.s32 0, %v43
    %v45 = vrot.slane %v38, %v44
    %v49 = vunpack.c.l.b16 %v36
    %v50 = vunpack.c.l.b16 %v37
    %v51 = vpack.c.b16 %v50, %v49
    %vm53 = vcmask 130048
    %v55 = vsel %vm53, %v40, 0
    %57 = vmatprep.subr.bf16.mxu0 0
    %58 = vmatpush1.bf16.msra.mxu0 %v51
    %59 = vmatprep.subr.bf16.mxu0 0
    %60 = vmatpush1.bf16.msra.mxu0 0
    %61 = vmatprep.subr.bf16.mxu0 0
    %62 = vmatpush1.bf16.msra.mxu0 0
    %63 = vmatprep.subr.bf16.mxu0 0
    %64 = vmatpush1.bf16.msra.mxu0 0
    %65 = vmatprep.subr.bf16.mxu0 0
    %66 = vmatpush1.bf16.msra.mxu0 0
    %67 = vmatprep.subr.bf16.mxu0 0
    %68 = vmatpush1.bf16.msra.mxu0 0
    %69 = vmatprep.subr.bf16.mxu0 0
    %70 = vmatpush1.bf16.msra.mxu0 0
    %71 = vmatprep.subr.bf16.mxu0 0
    %72 = vmatpush1.bf16.msra.mxu0 0
    %73 = vmatprep.subr.bf16.mxu0 0
    %74 = vmatpush1.bf16.msra.mxu0 0
    %75 = vmatprep.subr.bf16.mxu0 0
    %76 = vmatpush1.bf16.msra.mxu0 0
    %77 = vmatprep.subr.bf16.mxu0 0
    %78 = vmatpush1.bf16.msra.mxu0 0
    %79 = vmatprep.subr.bf16.mxu0 0
    %80 = vmatpush1.bf16.msra.mxu0 0
    %81 = vmatprep.subr.bf16.mxu0 0
    %82 = vmatpush1.bf16.msra.mxu0 0
    %83 = vmatprep.subr.bf16.mxu0 0
    %84 = vmatpush1.bf16.msra.mxu0 0
    %85 = vmatprep.subr.bf16.mxu0 0
    %86 = vmatpush1.bf16.msra.mxu0 0
    %87 = vmatprep.subr.bf16.mxu0 0
    %88 = vmatpush1.bf16.msra.mxu0 0
    %89 = vmatprep.mubr.bf16.mxu0 0
    %90 = vmatmul.mubr.bf16.gmra.mrb[0].mxu0 %v55
    %v91 = vpop.f32.mrb[0].mxu0
    %v92 = vadd.f32 %v45, %v91
    %v93 = vpop.f32.mrb[0].mxu0
    %v94 = vpop.f32.mrb[0].mxu0
    %v95 = vpop.f32.mrb[0].mxu0
    %96 = vdwg.mxu0
    %vm97 = vcmp.ge.f32.partialorder %v92, 0.0
    %v98 = vmul.f32 %v92, 0.01
    %v99 = vsel %vm97, %v92, %v98
    %v100 = vpack.c.bf16 %v99, %v99
    %101 = vst [vmem:[#allocation2] sm:$0x1] %v100
    %v102 = vld [vmem:[%s0] sm:$0x3]
    %v103 = vpack.c.bf16 %v102, %v102
    %105 = vrot.lane.b32.xlu0 %v103, 112
    %v106 = vpop.permute.xlu0 %105
    %v108 = vsel %vm53, %v106, 0
    %110 = vmatprep.subr.bf16.mxu0 0
    %111 = vmatpush1.bf16.msra.mxu0 %v51
    %112 = vmatprep.subr.bf16.mxu0 0
    %113 = vmatpush1.bf16.msra.mxu0 0
    %114 = vmatprep.subr.bf16.mxu0 0
    %115 = vmatpush1.bf16.msra.mxu0 0
    %116 = vmatprep.subr.bf16.mxu0 0
    %117 = vmatpush1.bf16.msra.mxu0 0
    %118 = vmatprep.subr.bf16.mxu0 0
    %119 = vmatpush1.bf16.msra.mxu0 0
    %120 = vmatprep.subr.bf16.mxu0 0
    %121 = vmatpush1.bf16.msra.mxu0 0
    %122 = vmatprep.subr.bf16.mxu0 0
    %123 = vmatpush1.bf16.msra.mxu0 0
    %124 = vmatprep.subr.bf16.mxu0 0
    %125 = vmatpush1.bf16.msra.mxu0 0
    %126 = vmatprep.subr.bf16.mxu0 0
    %127 = vmatpush1.bf16.msra.mxu0 0
    %128 = vmatprep.subr.bf16.mxu0 0
    %129 = vmatpush1.bf16.msra.mxu0 0
    %130 = vmatprep.subr.bf16.mxu0 0
    %131 = vmatpush1.bf16.msra.mxu0 0
    %132 = vmatprep.subr.bf16.mxu0 0
    %133 = vmatpush1.bf16.msra.mxu0 0
    %134 = vmatprep.subr.bf16.mxu0 0
    %135 = vmatpush1.bf16.msra.mxu0 0
    %136 = vmatprep.subr.bf16.mxu0 0
    %137 = vmatpush1.bf16.msra.mxu0 0
    %138 = vmatprep.subr.bf16.mxu0 0
    %139 = vmatpush1.bf16.msra.mxu0 0
    %140 = vmatprep.subr.bf16.mxu0 0
    %141 = vmatpush1.bf16.msra.mxu0 0
    %142 = vmatprep.mubr.bf16.mxu0 0
    %143 = vmatmul.mubr.bf16.gmra.mrb[0].mxu0 %v108
    %v144 = vpop.f32.mrb[0].mxu0
    %v145 = vadd.f32 %v45, %v144
    %v146 = vpop.f32.mrb[0].mxu0
    %v147 = vpop.f32.mrb[0].mxu0
    %v148 = vpop.f32.mrb[0].mxu0
    %149 = vdwg.mxu0
    %vm150 = vcmp.ge.f32.partialorder %v145, 0.0
    %v151 = vmul.f32 %v145, 0.01
    %v152 = vsel %vm150, %v145, %v151
    %v153 = vpack.c.bf16 %v152, %v152
    %154 = vst [vmem:[#allocation2 + $0x1] sm:$0x1] %v153
    %v155 = vld [vmem:[%s0] sm:$0x3]
    %v156 = vpack.c.bf16 %v155, %v155
    %158 = vrot.lane.b32.xlu0 %v156, 96
    %v159 = vpop.permute.xlu0 %158
    %v161 = vsel %vm53, %v159, 0
    %163 = vmatprep.subr.bf16.mxu0 0
    %164 = vmatpush1.bf16.msra.mxu0 %v51
    %165 = vmatprep.subr.bf16.mxu0 0
    %166 = vmatpush1.bf16.msra.mxu0 0
    %167 = vmatprep.subr.bf16.mxu0 0
    %168 = vmatpush1.bf16.msra.mxu0 0
    %169 = vmatprep.subr.bf16.mxu0 0
    %170 = vmatpush1.bf16.msra.mxu0 0
    %171 = vmatprep.subr.bf16.mxu0 0
    %172 = vmatpush1.bf16.msra.mxu0 0
    %173 = vmatprep.subr.bf16.mxu0 0
    %174 = vmatpush1.bf16.msra.mxu0 0
    %175 = vmatprep.subr.bf16.mxu0 0
    %176 = vmatpush1.bf16.msra.mxu0 0
    %177 = vmatprep.subr.bf16.mxu0 0
    %178 = vmatpush1.bf16.msra.mxu0 0
    %179 = vmatprep.subr.bf16.mxu0 0
    %180 = vmatpush1.bf16.msra.mxu0 0
    %181 = vmatprep.subr.bf16.mxu0 0
    %182 = vmatpush1.bf16.msra.mxu0 0
    %183 = vmatprep.subr.bf16.mxu0 0
    %184 = vmatpush1.bf16.msra.mxu0 0
    %185 = vmatprep.subr.bf16.mxu0 0
    %186 = vmatpush1.bf16.msra.mxu0 0
    %187 = vmatprep.subr.bf16.mxu0 0
    %188 = vmatpush1.bf16.msra.mxu0 0
    %189 = vmatprep.subr.bf16.mxu0 0
    %190 = vmatpush1.bf16.msra.mxu0 0
    %191 = vmatprep.subr.bf16.mxu0 0
    %192 = vmatpush1.bf16.msra.mxu0 0
    %193 = vmatprep.subr.bf16.mxu0 0
    %194 = vmatpush1.bf16.msra.mxu0 0
    %195 = vmatprep.mubr.bf16.mxu0 0
    %196 = vmatmul.mubr.bf16.gmra.mrb[0].mxu0 %v161
    %v197 = vpop.f32.mrb[0].mxu0
    %v198 = vadd.f32 %v45, %v197
    %v199 = vpop.f32.mrb[0].mxu0
    %v200 = vpop.f32.mrb[0].mxu0
    %v201 = vpop.f32.mrb[0].mxu0
    %202 = vdwg.mxu0
    %vm203 = vcmp.ge.f32.partialorder %v198, 0.0
    %v204 = vmul.f32 %v198, 0.01
    %v205 = vsel %vm203, %v198, %v204
    %v206 = vpack.c.bf16 %v205, %v205
    %207 = vst [vmem:[#allocation2 + $0x2] sm:$0x1] %v206
    %v208 = vld [vmem:[%s0] sm:$0x3]
    %v209 = vpack.c.bf16 %v208, %v208
    %211 = vrot.lane.b32.xlu0 %v209, 80
    %v212 = vpop.permute.xlu0 %211
    %v214 = vsel %vm53, %v212, 0
    %216 = vmatprep.subr.bf16.mxu0 0
    %217 = vmatpush1.bf16.msra.mxu0 %v51
    %218 = vmatprep.subr.bf16.mxu0 0
    %219 = vmatpush1.bf16.msra.mxu0 0
    %220 = vmatprep.subr.bf16.mxu0 0
    %221 = vmatpush1.bf16.msra.mxu0 0
    %222 = vmatprep.subr.bf16.mxu0 0
    %223 = vmatpush1.bf16.msra.mxu0 0
    %224 = vmatprep.subr.bf16.mxu0 0
    %225 = vmatpush1.bf16.msra.mxu0 0
    %226 = vmatprep.subr.bf16.mxu0 0
    %227 = vmatpush1.bf16.msra.mxu0 0
    %228 = vmatprep.subr.bf16.mxu0 0
    %229 = vmatpush1.bf16.msra.mxu0 0
    %230 = vmatprep.subr.bf16.mxu0 0
    %231 = vmatpush1.bf16.msra.mxu0 0
    %232 = vmatprep.subr.bf16.mxu0 0
    %233 = vmatpush1.bf16.msra.mxu0 0
    %234 = vmatprep.subr.bf16.mxu0 0
    %235 = vmatpush1.bf16.msra.mxu0 0
    %236 = vmatprep.subr.bf16.mxu0 0
    %237 = vmatpush1.bf16.msra.mxu0 0
    %238 = vmatprep.subr.bf16.mxu0 0
    %239 = vmatpush1.bf16.msra.mxu0 0
    %240 = vmatprep.subr.bf16.mxu0 0
    %241 = vmatpush1.bf16.msra.mxu0 0
    %242 = vmatprep.subr.bf16.mxu0 0
    %243 = vmatpush1.bf16.msra.mxu0 0
    %244 = vmatprep.subr.bf16.mxu0 0
    %245 = vmatpush1.bf16.msra.mxu0 0
    %246 = vmatprep.subr.bf16.mxu0 0
    %247 = vmatpush1.bf16.msra.mxu0 0
    %248 = vmatprep.mubr.bf16.mxu0 0
    %249 = vmatmul.mubr.bf16.gmra.mrb[0].mxu0 %v214
    %v250 = vpop.f32.mrb[0].mxu0
    %v251 = vadd.f32 %v45, %v250
    %v252 = vpop.f32.mrb[0].mxu0
    %v253 = vpop.f32.mrb[0].mxu0
    %v254 = vpop.f32.mrb[0].mxu0
    %255 = vdwg.mxu0
    %vm256 = vcmp.ge.f32.partialorder %v251, 0.0
    %v257 = vmul.f32 %v251, 0.01
    %v258 = vsel %vm256, %v251, %v257
    %v259 = vpack.c.bf16 %v258, %v258
    %260 = vst [vmem:[#allocation2 + $0x3] sm:$0x1] %v259
    %v261 = vld [vmem:[%s0] sm:$0x3]
    %v262 = vpack.c.bf16 %v261, %v261
    %264 = vrot.lane.b32.xlu0 %v262, 64
    %v265 = vpop.permute.xlu0 %264
    %v267 = vsel %vm53, %v265, 0
    %269 = vmatprep.subr.bf16.mxu0 0
    %270 = vmatpush1.bf16.msra.mxu0 %v51
    %271 = vmatprep.subr.bf16.mxu0 0
    %272 = vmatpush1.bf16.msra.mxu0 0
    %273 = vmatprep.subr.bf16.mxu0 0
    %274 = vmatpush1.bf16.msra.mxu0 0
    %275 = vmatprep.subr.bf16.mxu0 0
    %276 = vmatpush1.bf16.msra.mxu0 0
    %277 = vmatprep.subr.bf16.mxu0 0
    %278 = vmatpush1.bf16.msra.mxu0 0
    %279 = vmatprep.subr.bf16.mxu0 0
    %280 = vmatpush1.bf16.msra.mxu0 0
    %281 = vmatprep.subr.bf16.mxu0 0
    %282 = vmatpush1.bf16.msra.mxu0 0
    %283 = vmatprep.subr.bf16.mxu0 0
    %284 = vmatpush1.bf16.msra.mxu0 0
    %285 = vmatprep.subr.bf16.mxu0 0
    %286 = vmatpush1.bf16.msra.mxu0 0
    %287 = vmatprep.subr.bf16.mxu0 0
    %288 = vmatpush1.bf16.msra.mxu0 0
    %289 = vmatprep.subr.bf16.mxu0 0
    %290 = vmatpush1.bf16.msra.mxu0 0
    %291 = vmatprep.subr.bf16.mxu0 0
    %292 = vmatpush1.bf16.msra.mxu0 0
    %293 = vmatprep.subr.bf16.mxu0 0
    %294 = vmatpush1.bf16.msra.mxu0 0
    %295 = vmatprep.subr.bf16.mxu0 0
    %296 = vmatpush1.bf16.msra.mxu0 0
    %297 = vmatprep.subr.bf16.mxu0 0
    %298 = vmatpush1.bf16.msra.mxu0 0
    %299 = vmatprep.subr.bf16.mxu0 0
    %300 = vmatpush1.bf16.msra.mxu0 0
    %301 = vmatprep.mubr.bf16.mxu0 0
    %302 = vmatmul.mubr.bf16.gmra.mrb[0].mxu0 %v267
    %v303 = vpop.f32.mrb[0].mxu0
    %v304 = vadd.f32 %v45, %v303
    %v305 = vpop.f32.mrb[0].mxu0
    %v306 = vpop.f32.mrb[0].mxu0
    %v307 = vpop.f32.mrb[0].mxu0
    %308 = vdwg.mxu0
    %vm309 = vcmp.ge.f32.partialorder %v304, 0.0
    %v310 = vmul.f32 %v304, 0.01
    %v311 = vsel %vm309, %v304, %v310
    %v312 = vpack.c.bf16 %v311, %v311
    %313 = vst [vmem:[#allocation2 + $0x4] sm:$0x1] %v312
    %v314 = vld [vmem:[%s0] sm:$0x3]
    %v315 = vpack.c.bf16 %v314, %v314
    %317 = vrot.lane.b32.xlu0 %v315, 48
    %v318 = vpop.permute.xlu0 %317
    %v320 = vsel %vm53, %v318, 0
    %322 = vmatprep.subr.bf16.mxu0 0
    %323 = vmatpush1.bf16.msra.mxu0 %v51
    %324 = vmatprep.subr.bf16.mxu0 0
    %325 = vmatpush1.bf16.msra.mxu0 0
    %326 = vmatprep.subr.bf16.mxu0 0
    %327 = vmatpush1.bf16.msra.mxu0 0
    %328 = vmatprep.subr.bf16.mxu0 0
    %329 = vmatpush1.bf16.msra.mxu0 0
    %330 = vmatprep.subr.bf16.mxu0 0
    %331 = vmatpush1.bf16.msra.mxu0 0
    %332 = vmatprep.subr.bf16.mxu0 0
    %333 = vmatpush1.bf16.msra.mxu0 0
    %334 = vmatprep.subr.bf16.mxu0 0
    %335 = vmatpush1.bf16.msra.mxu0 0
    %336 = vmatprep.subr.bf16.mxu0 0
    %337 = vmatpush1.bf16.msra.mxu0 0
    %338 = vmatprep.subr.bf16.mxu0 0
    %339 = vmatpush1.bf16.msra.mxu0 0
    %340 = vmatprep.subr.bf16.mxu0 0
    %341 = vmatpush1.bf16.msra.mxu0 0
    %342 = vmatprep.subr.bf16.mxu0 0
    %343 = vmatpush1.bf16.msra.mxu0 0
    %344 = vmatprep.subr.bf16.mxu0 0
    %345 = vmatpush1.bf16.msra.mxu0 0
    %346 = vmatprep.subr.bf16.mxu0 0
    %347 = vmatpush1.bf16.msra.mxu0 0
    %348 = vmatprep.subr.bf16.mxu0 0
    %349 = vmatpush1.bf16.msra.mxu0 0
    %350 = vmatprep.subr.bf16.mxu0 0
    %351 = vmatpush1.bf16.msra.mxu0 0
    %352 = vmatprep.subr.bf16.mxu0 0
    %353 = vmatpush1.bf16.msra.mxu0 0
    %354 = vmatprep.mubr.bf16.mxu0 0
    %355 = vmatmul.mubr.bf16.gmra.mrb[0].mxu0 %v320
    %v356 = vpop.f32.mrb[0].mxu0
    %v357 = vadd.f32 %v45, %v356
    %v358 = vpop.f32.mrb[0].mxu0
    %v359 = vpop.f32.mrb[0].mxu0
    %v360 = vpop.f32.mrb[0].mxu0
    %361 = vdwg.mxu0
    %vm362 = vcmp.ge.f32.partialorder %v357, 0.0
    %v363 = vmul.f32 %v357, 0.01
    %v364 = vsel %vm362, %v357, %v363
    %v365 = vpack.c.bf16 %v364, %v364
    %366 = vst [vmem:[#allocation2 + $0x5] sm:$0x1] %v365
    %v367 = vld [vmem:[%s0] sm:$0x3]
    %v368 = vpack.c.bf16 %v367, %v367
    %370 = vrot.lane.b32.xlu0 %v368, 32
    %v371 = vpop.permute.xlu0 %370
    %v373 = vsel %vm53, %v371, 0
    %375 = vmatprep.subr.bf16.mxu0 0
    %376 = vmatpush1.bf16.msra.mxu0 %v51
    %377 = vmatprep.subr.bf16.mxu0 0
    %378 = vmatpush1.bf16.msra.mxu0 0
    %379 = vmatprep.subr.bf16.mxu0 0
    %380 = vmatpush1.bf16.msra.mxu0 0
    %381 = vmatprep.subr.bf16.mxu0 0
    %382 = vmatpush1.bf16.msra.mxu0 0
    %383 = vmatprep.subr.bf16.mxu0 0
    %384 = vmatpush1.bf16.msra.mxu0 0
    %385 = vmatprep.subr.bf16.mxu0 0
    %386 = vmatpush1.bf16.msra.mxu0 0
    %387 = vmatprep.subr.bf16.mxu0 0
    %388 = vmatpush1.bf16.msra.mxu0 0
    %389 = vmatprep.subr.bf16.mxu0 0
    %390 = vmatpush1.bf16.msra.mxu0 0
    %391 = vmatprep.subr.bf16.mxu0 0
    %392 = vmatpush1.bf16.msra.mxu0 0
    %393 = vmatprep.subr.bf16.mxu0 0
    %394 = vmatpush1.bf16.msra.mxu0 0
    %395 = vmatprep.subr.bf16.mxu0 0
    %396 = vmatpush1.bf16.msra.mxu0 0
    %397 = vmatprep.subr.bf16.mxu0 0
    %398 = vmatpush1.bf16.msra.mxu0 0
    %399 = vmatprep.subr.bf16.mxu0 0
    %400 = vmatpush1.bf16.msra.mxu0 0
    %401 = vmatprep.subr.bf16.mxu0 0
    %402 = vmatpush1.bf16.msra.mxu0 0
    %403 = vmatprep.subr.bf16.mxu0 0
    %404 = vmatpush1.bf16.msra.mxu0 0
    %405 = vmatprep.subr.bf16.mxu0 0
    %406 = vmatpush1.bf16.msra.mxu0 0
    %407 = vmatprep.mubr.bf16.mxu0 0
    %408 = vmatmul.mubr.bf16.gmra.mrb[0].mxu0 %v373
    %v409 = vpop.f32.mrb[0].mxu0
    %v410 = vadd.f32 %v45, %v409
    %v411 = vpop.f32.mrb[0].mxu0
    %v412 = vpop.f32.mrb[0].mxu0
    %v413 = vpop.f32.mrb[0].mxu0
    %414 = vdwg.mxu0
    %vm415 = vcmp.ge.f32.partialorder %v410, 0.0
    %v416 = vmul.f32 %v410, 0.01
    %v417 = vsel %vm415, %v410, %v416
    %v418 = vpack.c.bf16 %v417, %v417
    %419 = vst [vmem:[#allocation2 + $0x6] sm:$0x1] %v418
    %v420 = vld [vmem:[%s0] sm:$0x3]
    %v421 = vpack.c.bf16 %v420, %v420
    %423 = vrot.lane.b32.xlu0 %v421, 16
    %v424 = vpop.permute.xlu0 %423
    %v426 = vsel %vm53, %v424, 0
    %428 = vmatprep.subr.bf16.mxu0 0
    %429 = vmatpush1.bf16.msra.mxu0 %v51
    %430 = vmatprep.subr.bf16.mxu0 0
    %431 = vmatpush1.bf16.msra.mxu0 0
    %432 = vmatprep.subr.bf16.mxu0 0
    %433 = vmatpush1.bf16.msra.mxu0 0
    %434 = vmatprep.subr.bf16.mxu0 0
    %435 = vmatpush1.bf16.msra.mxu0 0
    %436 = vmatprep.subr.bf16.mxu0 0
    %437 = vmatpush1.bf16.msra.mxu0 0
    %438 = vmatprep.subr.bf16.mxu0 0
    %439 = vmatpush1.bf16.msra.mxu0 0
    %440 = vmatprep.subr.bf16.mxu0 0
    %441 = vmatpush1.bf16.msra.mxu0 0
    %442 = vmatprep.subr.bf16.mxu0 0
    %443 = vmatpush1.bf16.msra.mxu0 0
    %444 = vmatprep.subr.bf16.mxu0 0
    %445 = vmatpush1.bf16.msra.mxu0 0
    %446 = vmatprep.subr.bf16.mxu0 0
    %447 = vmatpush1.bf16.msra.mxu0 0
    %448 = vmatprep.subr.bf16.mxu0 0
    %449 = vmatpush1.bf16.msra.mxu0 0
    %450 = vmatprep.subr.bf16.mxu0 0
    %451 = vmatpush1.bf16.msra.mxu0 0
    %452 = vmatprep.subr.bf16.mxu0 0
    %453 = vmatpush1.bf16.msra.mxu0 0
    %454 = vmatprep.subr.bf16.mxu0 0
    %455 = vmatpush1.bf16.msra.mxu0 0
    %456 = vmatprep.subr.bf16.mxu0 0
    %457 = vmatpush1.bf16.msra.mxu0 0
    %458 = vmatprep.subr.bf16.mxu0 0
    %459 = vmatpush1.bf16.msra.mxu0 0
    %460 = vmatprep.mubr.bf16.mxu0 0
    %461 = vmatmul.mubr.bf16.gmra.mrb[0].mxu0 %v426
    %v462 = vpop.f32.mrb[0].mxu0
    %v463 = vadd.f32 %v45, %v462
    %v464 = vpop.f32.mrb[0].mxu0
    %v465 = vpop.f32.mrb[0].mxu0
    %v466 = vpop.f32.mrb[0].mxu0
    %467 = vdwg.mxu0
    %vm468 = vcmp.ge.f32.partialorder %v463, 0.0
    %v469 = vmul.f32 %v463, 0.01
    %v470 = vsel %vm468, %v463, %v469
    %v471 = vpack.c.bf16 %v470, %v470
    %472 = vst [vmem:[#allocation2 + $0x7] sm:$0x1] %v471
    %v473 = vld [vmem:[%s0 + $0x2] sm:$0x3]
    %v474 = vpack.c.bf16 %v473, %v473
    %v476 = vsel %vm53, %v474, 0
    %478 = vmatprep.subr.bf16.mxu0 0
    %479 = vmatpush1.bf16.msra.mxu0 %v51
    %480 = vmatprep.subr.bf16.mxu0 0
    %481 = vmatpush1.bf16.msra.mxu0 0
    %482 = vmatprep.subr.bf16.mxu0 0
    %483 = vmatpush1.bf16.msra.mxu0 0
    %484 = vmatprep.subr.bf16.mxu0 0
    %485 = vmatpush1.bf16.msra.mxu0 0
    %486 = vmatprep.subr.bf16.mxu0 0
    %487 = vmatpush1.bf16.msra.mxu0 0
    %488 = vmatprep.subr.bf16.mxu0 0
    %489 = vmatpush1.bf16.msra.mxu0 0
    %490 = vmatprep.subr.bf16.mxu0 0
    %491 = vmatpush1.bf16.msra.mxu0 0
    %492 = vmatprep.subr.bf16.mxu0 0
    %493 = vmatpush1.bf16.msra.mxu0 0
    %494 = vmatprep.subr.bf16.mxu0 0
    %495 = vmatpush1.bf16.msra.mxu0 0
    %496 = vmatprep.subr.bf16.mxu0 0
    %497 = vmatpush1.bf16.msra.mxu0 0
    %498 = vmatprep.subr.bf16.mxu0 0
    %499 = vmatpush1.bf16.msra.mxu0 0
    %500 = vmatprep.subr.bf16.mxu0 0
    %501 = vmatpush1.bf16.msra.mxu0 0
    %502 = vmatprep.subr.bf16.mxu0 0
    %503 = vmatpush1.bf16.msra.mxu0 0
    %504 = vmatprep.subr.bf16.mxu0 0
    %505 = vmatpush1.bf16.msra.mxu0 0
    %506 = vmatprep.subr.bf16.mxu0 0
    %507 = vmatpush1.bf16.msra.mxu0 0
    %508 = vmatprep.subr.bf16.mxu0 0
    %509 = vmatpush1.bf16.msra.mxu0 0
    %510 = vmatprep.mubr.bf16.mxu0 0
    %511 = vmatmul.mubr.bf16.gmra.mrb[0].mxu0 %v476
    %v512 = vpop.f32.mrb[0].mxu0
    %v513 = vadd.f32 %v45, %v512
    %v514 = vpop.f32.mrb[0].mxu0
    %v515 = vpop.f32.mrb[0].mxu0
    %v516 = vpop.f32.mrb[0].mxu0
    %517 = vdwg.mxu0
    %vm518 = vcmp.ge.f32.partialorder %v513, 0.0
    %v519 = vmul.f32 %v513, 0.01
    %v520 = vsel %vm518, %v513, %v519
    %v521 = vpack.c.bf16 %v520, %v520
    %522 = vst [vmem:[#allocation2 + $0x8] sm:$0x1] %v521
    %v523 = vld [vmem:[%s0 + $0x2] sm:$0x3]
    %v524 = vpack.c.bf16 %v523, %v523
    %526 = vrot.lane.b32.xlu0 %v524, 112
    %v527 = vpop.permute.xlu0 %526
    %v529 = vsel %vm53, %v527, 0
    %531 = vmatprep.subr.bf16.mxu0 0
    %532 = vmatpush1.bf16.msra.mxu0 %v51
    %533 = vmatprep.subr.bf16.mxu0 0
    %534 = vmatpush1.bf16.msra.mxu0 0
    %535 = vmatprep.subr.bf16.mxu0 0
    %536 = vmatpush1.bf16.msra.mxu0 0
    %537 = vmatprep.subr.bf16.mxu0 0
    %538 = vmatpush1.bf16.msra.mxu0 0
    %539 = vmatprep.subr.bf16.mxu0 0
    %540 = vmatpush1.bf16.msra.mxu0 0
    %541 = vmatprep.subr.bf16.mxu0 0
    %542 = vmatpush1.bf16.msra.mxu0 0
    %543 = vmatprep.subr.bf16.mxu0 0
    %544 = vmatpush1.bf16.msra.mxu0 0
    %545 = vmatprep.subr.bf16.mxu0 0
    %546 = vmatpush1.bf16.msra.mxu0 0
    %547 = vmatprep.subr.bf16.mxu0 0
    %548 = vmatpush1.bf16.msra.mxu0 0
    %549 = vmatprep.subr.bf16.mxu0 0
    %550 = vmatpush1.bf16.msra.mxu0 0
    %551 = vmatprep.subr.bf16.mxu0 0
    %552 = vmatpush1.bf16.msra.mxu0 0
    %553 = vmatprep.subr.bf16.mxu0 0
    %554 = vmatpush1.bf16.msra.mxu0 0
    %555 = vmatprep.subr.bf16.mxu0 0
    %556 = vmatpush1.bf16.msra.mxu0 0
    %557 = vmatprep.subr.bf16.mxu0 0
    %558 = vmatpush1.bf16.msra.mxu0 0
    %559 = vmatprep.subr.bf16.mxu0 0
    %560 = vmatpush1.bf16.msra.mxu0 0
    %561 = vmatprep.subr.bf16.mxu0 0
    %562 = vmatpush1.bf16.msra.mxu0 0
    %563 = vmatprep.mubr.bf16.mxu0 0
    %564 = vmatmul.mubr.bf16.gmra.mrb[0].mxu0 %v529
    %v565 = vpop.f32.mrb[0].mxu0
    %v566 = vadd.f32 %v45, %v565
    %v567 = vpop.f32.mrb[0].mxu0
    %v568 = vpop.f32.mrb[0].mxu0
    %v569 = vpop.f32.mrb[0].mxu0
    %570 = vdwg.mxu0
    %vm571 = vcmp.ge.f32.partialorder %v566, 0.0
    %v572 = vmul.f32 %v566, 0.01
    %v573 = vsel %vm571, %v566, %v572
    %v574 = vpack.c.bf16 %v573, %v573
    %575 = vst [vmem:[#allocation2 + $0x9] sm:$0x1] %v574
    %v576 = vld [vmem:[%s0 + $0x2] sm:$0x3]
    %v577 = vpack.c.bf16 %v576, %v576
    %579 = vrot.lane.b32.xlu0 %v577, 96
    %v580 = vpop.permute.xlu0 %579
    %v582 = vsel %vm53, %v580, 0
    %584 = vmatprep.subr.bf16.mxu0 0
    %585 = vmatpush1.bf16.msra.mxu0 %v51
    %586 = vmatprep.subr.bf16.mxu0 0
    %587 = vmatpush1.bf16.msra.mxu0 0
    %588 = vmatprep.subr.bf16.mxu0 0
    %589 = vmatpush1.bf16.msra.mxu0 0
    %590 = vmatprep.subr.bf16.mxu0 0
    %591 = vmatpush1.bf16.msra.mxu0 0
    %592 = vmatprep.subr.bf16.mxu0 0
    %593 = vmatpush1.bf16.msra.mxu0 0
    %594 = vmatprep.subr.bf16.mxu0 0
    %595 = vmatpush1.bf16.msra.mxu0 0
    %596 = vmatprep.subr.bf16.mxu0 0
    %597 = vmatpush1.bf16.msra.mxu0 0
    %598 = vmatprep.subr.bf16.mxu0 0
    %599 = vmatpush1.bf16.msra.mxu0 0
    %600 = vmatprep.subr.bf16.mxu0 0
    %601 = vmatpush1.bf16.msra.mxu0 0
    %602 = vmatprep.subr.bf16.mxu0 0
    %603 = vmatpush1.bf16.msra.mxu0 0
    %604 = vmatprep.subr.bf16.mxu0 0
    %605 = vmatpush1.bf16.msra.mxu0 0
    %606 = vmatprep.subr.bf16.mxu0 0
    %607 = vmatpush1.bf16.msra.mxu0 0
    %608 = vmatprep.subr.bf16.mxu0 0
    %609 = vmatpush1.bf16.msra.mxu0 0
    %610 = vmatprep.subr.bf16.mxu0 0
    %611 = vmatpush1.bf16.msra.mxu0 0
    %612 = vmatprep.subr.bf16.mxu0 0
    %613 = vmatpush1.bf16.msra.mxu0 0
    %614 = vmatprep.subr.bf16.mxu0 0
    %615 = vmatpush1.bf16.msra.mxu0 0
    %616 = vmatprep.mubr.bf16.mxu0 0
    %617 = vmatmul.mubr.bf16.gmra.mrb[0].mxu0 %v582
    %v618 = vpop.f32.mrb[0].mxu0
    %v619 = vadd.f32 %v45, %v618
    %v620 = vpop.f32.mrb[0].mxu0
    %v621 = vpop.f32.mrb[0].mxu0
    %v622 = vpop.f32.mrb[0].mxu0
    %623 = vdwg.mxu0
    %vm624 = vcmp.ge.f32.partialorder %v619, 0.0
    %v625 = vmul.f32 %v619, 0.01
    %v626 = vsel %vm624, %v619, %v625
    %v627 = vpack.c.bf16 %v626, %v626
    %628 = vst [vmem:[#allocation2 + $0xa] sm:$0x1] %v627
    %v629 = vld [vmem:[%s0 + $0x2] sm:$0x3]
    %v630 = vpack.c.bf16 %v629, %v629
    %632 = vrot.lane.b32.xlu0 %v630, 80
    %v633 = vpop.permute.xlu0 %632
    %v635 = vsel %vm53, %v633, 0
    %637 = vmatprep.subr.bf16.mxu0 0
    %638 = vmatpush1.bf16.msra.mxu0 %v51
    %639 = vmatprep.subr.bf16.mxu0 0
    %640 = vmatpush1.bf16.msra.mxu0 0
    %641 = vmatprep.subr.bf16.mxu0 0
    %642 = vmatpush1.bf16.msra.mxu0 0
    %643 = vmatprep.subr.bf16.mxu0 0
    %644 = vmatpush1.bf16.msra.mxu0 0
    %645 = vmatprep.subr.bf16.mxu0 0
    %646 = vmatpush1.bf16.msra.mxu0 0
    %647 = vmatprep.subr.bf16.mxu0 0
    %648 = vmatpush1.bf16.msra.mxu0 0
    %649 = vmatprep.subr.bf16.mxu0 0
    %650 = vmatpush1.bf16.msra.mxu0 0
    %651 = vmatprep.subr.bf16.mxu0 0
    %652 = vmatpush1.bf16.msra.mxu0 0
    %653 = vmatprep.subr.bf16.mxu0 0
    %654 = vmatpush1.bf16.msra.mxu0 0
    %655 = vmatprep.subr.bf16.mxu0 0
    %656 = vmatpush1.bf16.msra.mxu0 0
    %657 = vmatprep.subr.bf16.mxu0 0
    %658 = vmatpush1.bf16.msra.mxu0 0
    %659 = vmatprep.subr.bf16.mxu0 0
    %660 = vmatpush1.bf16.msra.mxu0 0
    %661 = vmatprep.subr.bf16.mxu0 0
    %662 = vmatpush1.bf16.msra.mxu0 0
    %663 = vmatprep.subr.bf16.mxu0 0
    %664 = vmatpush1.bf16.msra.mxu0 0
    %665 = vmatprep.subr.bf16.mxu0 0
    %666 = vmatpush1.bf16.msra.mxu0 0
    %667 = vmatprep.subr.bf16.mxu0 0
    %668 = vmatpush1.bf16.msra.mxu0 0
    %669 = vmatprep.mubr.bf16.mxu0 0
    %670 = vmatmul.mubr.bf16.gmra.mrb[0].mxu0 %v635
    %v671 = vpop.f32.mrb[0].mxu0
    %v672 = vadd.f32 %v45, %v671
    %v673 = vpop.f32.mrb[0].mxu0
    %v674 = vpop.f32.mrb[0].mxu0
    %v675 = vpop.f32.mrb[0].mxu0
    %676 = vdwg.mxu0
    %vm677 = vcmp.ge.f32.partialorder %v672, 0.0
    %v678 = vmul.f32 %v672, 0.01
    %v679 = vsel %vm677, %v672, %v678
    %v680 = vpack.c.bf16 %v679, %v679
    %681 = vst [vmem:[#allocation2 + $0xb] sm:$0x1] %v680
    %v682 = vld [vmem:[%s0 + $0x2] sm:$0x3]
    %v683 = vpack.c.bf16 %v682, %v682
    %685 = vrot.lane.b32.xlu0 %v683, 64
    %v686 = vpop.permute.xlu0 %685
    %v688 = vsel %vm53, %v686, 0
    %690 = vmatprep.subr.bf16.mxu0 0
    %691 = vmatpush1.bf16.msra.mxu0 %v51
    %692 = vmatprep.subr.bf16.mxu0 0
    %693 = vmatpush1.bf16.msra.mxu0 0
    %694 = vmatprep.subr.bf16.mxu0 0
    %695 = vmatpush1.bf16.msra.mxu0 0
    %696 = vmatprep.subr.bf16.mxu0 0
    %697 = vmatpush1.bf16.msra.mxu0 0
    %698 = vmatprep.subr.bf16.mxu0 0
    %699 = vmatpush1.bf16.msra.mxu0 0
    %700 = vmatprep.subr.bf16.mxu0 0
    %701 = vmatpush1.bf16.msra.mxu0 0
    %702 = vmatprep.subr.bf16.mxu0 0
    %703 = vmatpush1.bf16.msra.mxu0 0
    %704 = vmatprep.subr.bf16.mxu0 0
    %705 = vmatpush1.bf16.msra.mxu0 0
    %706 = vmatprep.subr.bf16.mxu0 0
    %707 = vmatpush1.bf16.msra.mxu0 0
    %708 = vmatprep.subr.bf16.mxu0 0
    %709 = vmatpush1.bf16.msra.mxu0 0
    %710 = vmatprep.subr.bf16.mxu0 0
    %711 = vmatpush1.bf16.msra.mxu0 0
    %712 = vmatprep.subr.bf16.mxu0 0
    %713 = vmatpush1.bf16.msra.mxu0 0
    %714 = vmatprep.subr.bf16.mxu0 0
    %715 = vmatpush1.bf16.msra.mxu0 0
    %716 = vmatprep.subr.bf16.mxu0 0
    %717 = vmatpush1.bf16.msra.mxu0 0
    %718 = vmatprep.subr.bf16.mxu0 0
    %719 = vmatpush1.bf16.msra.mxu0 0
    %720 = vmatprep.subr.bf16.mxu0 0
    %721 = vmatpush1.bf16.msra.mxu0 0
    %722 = vmatprep.mubr.bf16.mxu0 0
    %723 = vmatmul.mubr.bf16.gmra.mrb[0].mxu0 %v688
    %v724 = vpop.f32.mrb[0].mxu0
    %v725 = vadd.f32 %v45, %v724
    %v726 = vpop.f32.mrb[0].mxu0
    %v727 = vpop.f32.mrb[0].mxu0
    %v728 = vpop.f32.mrb[0].mxu0
    %729 = vdwg.mxu0
    %vm730 = vcmp.ge.f32.partialorder %v725, 0.0
    %v731 = vmul.f32 %v725, 0.01
    %v732 = vsel %vm730, %v725, %v731
    %v733 = vpack.c.bf16 %v732, %v732
    %734 = vst [vmem:[#allocation2 + $0xc] sm:$0x1] %v733
    %v735 = vld [vmem:[%s0 + $0x2] sm:$0x3]
    %v736 = vpack.c.bf16 %v735, %v735
    %738 = vrot.lane.b32.xlu0 %v736, 48
    %v739 = vpop.permute.xlu0 %738
    %v741 = vsel %vm53, %v739, 0
    %743 = vmatprep.subr.bf16.mxu0 0
    %744 = vmatpush1.bf16.msra.mxu0 %v51
    %745 = vmatprep.subr.bf16.mxu0 0
    %746 = vmatpush1.bf16.msra.mxu0 0
    %747 = vmatprep.subr.bf16.mxu0 0
    %748 = vmatpush1.bf16.msra.mxu0 0
    %749 = vmatprep.subr.bf16.mxu0 0
    %750 = vmatpush1.bf16.msra.mxu0 0
    %751 = vmatprep.subr.bf16.mxu0 0
    %752 = vmatpush1.bf16.msra.mxu0 0
    %753 = vmatprep.subr.bf16.mxu0 0
    %754 = vmatpush1.bf16.msra.mxu0 0
    %755 = vmatprep.subr.bf16.mxu0 0
    %756 = vmatpush1.bf16.msra.mxu0 0
    %757 = vmatprep.subr.bf16.mxu0 0
    %758 = vmatpush1.bf16.msra.mxu0 0
    %759 = vmatprep.subr.bf16.mxu0 0
    %760 = vmatpush1.bf16.msra.mxu0 0
    %761 = vmatprep.subr.bf16.mxu0 0
    %762 = vmatpush1.bf16.msra.mxu0 0
    %763 = vmatprep.subr.bf16.mxu0 0
    %764 = vmatpush1.bf16.msra.mxu0 0
    %765 = vmatprep.subr.bf16.mxu0 0
    %766 = vmatpush1.bf16.msra.mxu0 0
    %767 = vmatprep.subr.bf16.mxu0 0
    %768 = vmatpush1.bf16.msra.mxu0 0
    %769 = vmatprep.subr.bf16.mxu0 0
    %770 = vmatpush1.bf16.msra.mxu0 0
    %771 = vmatprep.subr.bf16.mxu0 0
    %772 = vmatpush1.bf16.msra.mxu0 0
    %773 = vmatprep.subr.bf16.mxu0 0
    %774 = vmatpush1.bf16.msra.mxu0 0
    %775 = vmatprep.mubr.bf16.mxu0 0
    %776 = vmatmul.mubr.bf16.gmra.mrb[0].mxu0 %v741
    %v777 = vpop.f32.mrb[0].mxu0
    %v778 = vadd.f32 %v45, %v777
    %v779 = vpop.f32.mrb[0].mxu0
    %v780 = vpop.f32.mrb[0].mxu0
    %v781 = vpop.f32.mrb[0].mxu0
    %782 = vdwg.mxu0
    %vm783 = vcmp.ge.f32.partialorder %v778, 0.0
    %v784 = vmul.f32 %v778, 0.01
    %v785 = vsel %vm783, %v778, %v784
    %v786 = vpack.c.bf16 %v785, %v785
    %787 = vst [vmem:[#allocation2 + $0xd] sm:$0x1] %v786
    %v788 = vld [vmem:[%s0 + $0x2] sm:$0x3]
    %v789 = vpack.c.bf16 %v788, %v788
    %791 = vrot.lane.b32.xlu0 %v789, 32
    %v792 = vpop.permute.xlu0 %791
    %v794 = vsel %vm53, %v792, 0
    %796 = vmatprep.subr.bf16.mxu0 0
    %797 = vmatpush1.bf16.msra.mxu0 %v51
    %798 = vmatprep.subr.bf16.mxu0 0
    %799 = vmatpush1.bf16.msra.mxu0 0
    %800 = vmatprep.subr.bf16.mxu0 0
    %801 = vmatpush1.bf16.msra.mxu0 0
    %802 = vmatprep.subr.bf16.mxu0 0
    %803 = vmatpush1.bf16.msra.mxu0 0
    %804 = vmatprep.subr.bf16.mxu0 0
    %805 = vmatpush1.bf16.msra.mxu0 0
    %806 = vmatprep.subr.bf16.mxu0 0
    %807 = vmatpush1.bf16.msra.mxu0 0
    %808 = vmatprep.subr.bf16.mxu0 0
    %809 = vmatpush1.bf16.msra.mxu0 0
    %810 = vmatprep.subr.bf16.mxu0 0
    %811 = vmatpush1.bf16.msra.mxu0 0
    %812 = vmatprep.subr.bf16.mxu0 0
    %813 = vmatpush1.bf16.msra.mxu0 0
    %814 = vmatprep.subr.bf16.mxu0 0
    %815 = vmatpush1.bf16.msra.mxu0 0
    %816 = vmatprep.subr.bf16.mxu0 0
    %817 = vmatpush1.bf16.msra.mxu0 0
    %818 = vmatprep.subr.bf16.mxu0 0
    %819 = vmatpush1.bf16.msra.mxu0 0
    %820 = vmatprep.subr.bf16.mxu0 0
    %821 = vmatpush1.bf16.msra.mxu0 0
    %822 = vmatprep.subr.bf16.mxu0 0
    %823 = vmatpush1.bf16.msra.mxu0 0
    %824 = vmatprep.subr.bf16.mxu0 0
    %825 = vmatpush1.bf16.msra.mxu0 0
    %826 = vmatprep.subr.bf16.mxu0 0
    %827 = vmatpush1.bf16.msra.mxu0 0
    %828 = vmatprep.mubr.bf16.mxu0 0
    %829 = vmatmul.mubr.bf16.gmra.mrb[0].mxu0 %v794
    %v830 = vpop.f32.mrb[0].mxu0
    %v831 = vadd.f32 %v45, %v830
    %v832 = vpop.f32.mrb[0].mxu0
    %v833 = vpop.f32.mrb[0].mxu0
    %v834 = vpop.f32.mrb[0].mxu0
    %835 = vdwg.mxu0
    %vm836 = vcmp.ge.f32.partialorder %v831, 0.0
    %v837 = vmul.f32 %v831, 0.01
    %v838 = vsel %vm836, %v831, %v837
    %v839 = vpack.c.bf16 %v838, %v838
    %840 = vst [vmem:[#allocation2 + $0xe] sm:$0x1] %v839
    %v841 = vld [vmem:[%s0 + $0x2] sm:$0x3]
    %v842 = vpack.c.bf16 %v841, %v841
    %844 = vrot.lane.b32.xlu0 %v842, 16
    %v845 = vpop.permute.xlu0 %844
    %v847 = vsel %vm53, %v845, 0
    %849 = vmatprep.subr.bf16.mxu0 0
    %850 = vmatpush1.bf16.msra.mxu0 %v51
    %851 = vmatprep.subr.bf16.mxu0 0
    %852 = vmatpush1.bf16.msra.mxu0 0
    %853 = vmatprep.subr.bf16.mxu0 0
    %854 = vmatpush1.bf16.msra.mxu0 0
    %855 = vmatprep.subr.bf16.mxu0 0
    %856 = vmatpush1.bf16.msra.mxu0 0
    %857 = vmatprep.subr.bf16.mxu0 0
    %858 = vmatpush1.bf16.msra.mxu0 0
    %859 = vmatprep.subr.bf16.mxu0 0
    %860 = vmatpush1.bf16.msra.mxu0 0
    %861 = vmatprep.subr.bf16.mxu0 0
    %862 = vmatpush1.bf16.msra.mxu0 0
    %863 = vmatprep.subr.bf16.mxu0 0
    %864 = vmatpush1.bf16.msra.mxu0 0
    %865 = vmatprep.subr.bf16.mxu0 0
    %866 = vmatpush1.bf16.msra.mxu0 0
    %867 = vmatprep.subr.bf16.mxu0 0
    %868 = vmatpush1.bf16.msra.mxu0 0
    %869 = vmatprep.subr.bf16.mxu0 0
    %870 = vmatpush1.bf16.msra.mxu0 0
    %871 = vmatprep.subr.bf16.mxu0 0
    %872 = vmatpush1.bf16.msra.mxu0 0
    %873 = vmatprep.subr.bf16.mxu0 0
    %874 = vmatpush1.bf16.msra.mxu0 0
    %875 = vmatprep.subr.bf16.mxu0 0
    %876 = vmatpush1.bf16.msra.mxu0 0
    %877 = vmatprep.subr.bf16.mxu0 0
    %878 = vmatpush1.bf16.msra.mxu0 0
    %879 = vmatprep.subr.bf16.mxu0 0
    %880 = vmatpush1.bf16.msra.mxu0 0
    %881 = vmatprep.mubr.bf16.mxu0 0
    %882 = vmatmul.mubr.bf16.gmra.mrb[0].mxu0 %v847
    %v883 = vpop.f32.mrb[0].mxu0
    %v884 = vadd.f32 %v45, %v883
    %v885 = vpop.f32.mrb[0].mxu0
    %v886 = vpop.f32.mrb[0].mxu0
    %v887 = vpop.f32.mrb[0].mxu0
    %888 = vdwg.mxu0
    %vm889 = vcmp.ge.f32.partialorder %v884, 0.0
    %v890 = vmul.f32 %v884, 0.01
    %v891 = vsel %vm889, %v884, %v890
    %v892 = vpack.c.bf16 %v891, %v891
    %893 = vst [vmem:[#allocation2 + $0xf] sm:$0x1] %v892
    %v894 = vld [vmem:[#allocation2] sm:$0xff]
    %v895 = vld [vmem:[#allocation2 + $0x8] sm:$0xff]
    %v896 = vld [vmem:[#allocation3] sm:$0xf]
    %v897 = vld [vmem:[#allocation3 + $0x4] sm:$0xf]
    %v898 = vld [vmem:[#allocation3 + $0x8] sm:$0xf]
    %v899 = vld [vmem:[#allocation3 + $0xc] sm:$0xf]
    %v900 = vld [vmem:[#allocation3 + $0x10] sm:$0xf]
    %v901 = vld [vmem:[#allocation3 + $0x14] sm:$0xf]
    %v902 = vld [vmem:[#allocation3 + $0x18] sm:$0xf]
    %v903 = vld [vmem:[#allocation3 + $0x1c] sm:$0xf]
    %v904 = vld [vmem:[#allocation3 + $0x20] sm:$0xf]
    %v905 = vld [vmem:[#allocation3 + $0x24] sm:$0xf]
    %v906 = vld [vmem:[#allocation3 + $0x28] sm:$0xf]
    %v907 = vld [vmem:[#allocation3 + $0x2c] sm:$0xf]
    %v908 = vld [vmem:[#allocation3 + $0x30] sm:$0xf]
    %v909 = vld [vmem:[#allocation3 + $0x34] sm:$0xf]
    %v910 = vld [vmem:[#allocation3 + $0x38] sm:$0xf]
    %v911 = vld [vmem:[#allocation3 + $0x3c] sm:$0xf]
    %v912 = vld [vmem:[#allocation3 + $0x40] sm:$0xf]
    %v913 = vld [vmem:[#allocation3 + $0x44] sm:$0xf]
    %v914 = vld [vmem:[#allocation3 + $0x48] sm:$0xf]
    %v915 = vld [vmem:[#allocation3 + $0x4c] sm:$0xf]
    %v916 = vld [vmem:[#allocation3 + $0x50] sm:$0xf]
    %v917 = vld [vmem:[#allocation3 + $0x54] sm:$0xf]
    %v918 = vld [vmem:[#allocation3 + $0x58] sm:$0xf]
    %v919 = vld [vmem:[#allocation3 + $0x5c] sm:$0xf]
    %v920 = vld [vmem:[#allocation3 + $0x60] sm:$0xf]
    %v921 = vld [vmem:[#allocation3 + $0x64] sm:$0xf]
    %v922 = vld [vmem:[#allocation3 + $0x68] sm:$0xf]
    %v923 = vld [vmem:[#allocation3 + $0x6c] sm:$0xf]
    %v924 = vld [vmem:[#allocation3 + $0x70] sm:$0xf]
    %v925 = vld [vmem:[#allocation3 + $0x74] sm:$0xf]
    %v926 = vld [vmem:[#allocation3 + $0x78] sm:$0xf]
    %v927 = vld [vmem:[#allocation3 + $0x7c] sm:$0xf]
    %v928 = vld [vmem:[#allocation3 + $0x80] sm:$0xf]
    %v929 = vld [vmem:[#allocation3 + $0x84] sm:$0xf]
    %v930 = vld [vmem:[#allocation3 + $0x88] sm:$0xf]
    %v931 = vld [vmem:[#allocation3 + $0x8c] sm:$0xf]
    %v932 = vld [vmem:[#allocation3 + $0x90] sm:$0xf]
    %v933 = vld [vmem:[#allocation3 + $0x94] sm:$0xf]
    %v934 = vld [vmem:[#allocation3 + $0x98] sm:$0xf]
    %v935 = vld [vmem:[#allocation3 + $0x9c] sm:$0xf]
    %v936 = vld [vmem:[#allocation3 + $0xa0] sm:$0xf]
    %v937 = vld [vmem:[#allocation3 + $0xa4] sm:$0xf]
    %v938 = vld [vmem:[#allocation3 + $0xa8] sm:$0xf]
    %v939 = vld [vmem:[#allocation3 + $0xac] sm:$0xf]
    %v940 = vld [vmem:[#allocation3 + $0xb0] sm:$0xf]
    %v941 = vld [vmem:[#allocation3 + $0xb4] sm:$0xf]
    %v942 = vld [vmem:[#allocation3 + $0xb8] sm:$0xf]
    %v943 = vld [vmem:[#allocation3 + $0xbc] sm:$0xf]
    %v944 = vld [vmem:[#allocation3 + $0xc0] sm:$0xf]
    %v945 = vld [vmem:[#allocation3 + $0xc4] sm:$0xf]
    %v946 = vld [vmem:[#allocation3 + $0xc8] sm:$0xf]
    %v947 = vld [vmem:[#allocation3 + $0xcc] sm:$0xf]
    %v948 = vld [vmem:[#allocation3 + $0xd0] sm:$0xf]
    %v949 = vld [vmem:[#allocation3 + $0xd4] sm:$0xf]
    %v950 = vld [vmem:[#allocation3 + $0xd8] sm:$0xf]
    %v951 = vld [vmem:[#allocation3 + $0xdc] sm:$0xf]
    %v952 = vld [vmem:[#allocation3 + $0xe0] sm:$0xf]
    %v953 = vld [vmem:[#allocation3 + $0xe4] sm:$0xf]
    %v954 = vld [vmem:[#allocation3 + $0xe8] sm:$0xf]
    %v955 = vld [vmem:[#allocation3 + $0xec] sm:$0xf]
    %v956 = vld [vmem:[#allocation3 + $0xf0] sm:$0xf]
    %v957 = vld [vmem:[#allocation3 + $0xf4] sm:$0xf]
    %v958 = vld [vmem:[#allocation3 + $0xf8] sm:$0xf]
    %v959 = vld [vmem:[#allocation3 + $0xfc] sm:$0xf]
    %v960 = vld [vmem:[#allocation3 + $0x100] sm:$0xf]
    %v961 = vld [vmem:[#allocation3 + $0x104] sm:$0xf]
    %v962 = vld [vmem:[#allocation3 + $0x108] sm:$0xf]
    %v963 = vld [vmem:[#allocation3 + $0x10c] sm:$0xf]
    %v964 = vld [vmem:[#allocation3 + $0x110] sm:$0xf]
    %v965 = vld [vmem:[#allocation3 + $0x114] sm:$0xf]
    %v966 = vld [vmem:[#allocation3 + $0x118] sm:$0xf]
    %v967 = vld [vmem:[#allocation3 + $0x11c] sm:$0xf]
    %v968 = vld [vmem:[#allocation3 + $0x120] sm:$0xf]
    %v969 = vld [vmem:[#allocation3 + $0x124] sm:$0xf]
    %v970 = vld [vmem:[#allocation3 + $0x128] sm:$0xf]
    %v971 = vld [vmem:[#allocation3 + $0x12c] sm:$0xf]
    %v972 = vld [vmem:[#allocation3 + $0x130] sm:$0xf]
    %v973 = vld [vmem:[#allocation3 + $0x134] sm:$0xf]
    %v974 = vld [vmem:[#allocation3 + $0x138] sm:$0xf]
    %v975 = vld [vmem:[#allocation3 + $0x13c] sm:$0xf]
    %v976 = vld [vmem:[#allocation3 + $0x140] sm:$0xf]
    %v977 = vld [vmem:[#allocation3 + $0x144] sm:$0xf]
    %v978 = vld [vmem:[#allocation3 + $0x148] sm:$0xf]
    %v979 = vld [vmem:[#allocation3 + $0x14c] sm:$0xf]
    %v980 = vld [vmem:[#allocation3 + $0x150] sm:$0xf]
    %v981 = vld [vmem:[#allocation3 + $0x154] sm:$0xf]
    %v982 = vld [vmem:[#allocation3 + $0x158] sm:$0xf]
    %v983 = vld [vmem:[#allocation3 + $0x15c] sm:$0xf]
    %v984 = vld [vmem:[#allocation3 + $0x160] sm:$0xf]
    %v985 = vld [vmem:[#allocation3 + $0x164] sm:$0xf]
    %v986 = vld [vmem:[#allocation3 + $0x168] sm:$0xf]
    %v987 = vld [vmem:[#allocation3 + $0x16c] sm:$0xf]
    %v988 = vld [vmem:[#allocation3 + $0x170] sm:$0xf]
    %v989 = vld [vmem:[#allocation3 + $0x174] sm:$0xf]
    %v990 = vld [vmem:[#allocation3 + $0x178] sm:$0xf]
    %v991 = vld [vmem:[#allocation3 + $0x17c] sm:$0xf]
    %v992 = vld [vmem:[#allocation3 + $0x180] sm:$0xf]
    %v993 = vld [vmem:[#allocation3 + $0x184] sm:$0xf]
    %v994 = vld [vmem:[#allocation3 + $0x188] sm:$0xf]
    %v995 = vld [vmem:[#allocation3 + $0x18c] sm:$0xf]
    %v996 = vld [vmem:[#allocation3 + $0x190] sm:$0xf]
    %v997 = vld [vmem:[#allocation3 + $0x194] sm:$0xf]
    %v998 = vld [vmem:[#allocation3 + $0x198] sm:$0xf]
    %v999 = vld [vmem:[#allocation3 + $0x19c] sm:$0xf]
    %v1000 = vld [vmem:[#allocation3 + $0x1a0] sm:$0xf]
    %v1001 = vld [vmem:[#allocation3 + $0x1a4] sm:$0xf]
    %v1002 = vld [vmem:[#allocation3 + $0x1a8] sm:$0xf]
    %v1003 = vld [vmem:[#allocation3 + $0x1ac] sm:$0xf]
    %v1004 = vld [vmem:[#allocation3 + $0x1b0] sm:$0xf]
    %v1005 = vld [vmem:[#allocation3 + $0x1b4] sm:$0xf]
    %v1006 = vld [vmem:[#allocation3 + $0x1b8] sm:$0xf]
    %v1007 = vld [vmem:[#allocation3 + $0x1bc] sm:$0xf]
    %v1008 = vld [vmem:[#allocation3 + $0x1c0] sm:$0xf]
    %v1009 = vld [vmem:[#allocation3 + $0x1c4] sm:$0xf]
    %v1010 = vld [vmem:[#allocation3 + $0x1c8] sm:$0xf]
    %v1011 = vld [vmem:[#allocation3 + $0x1cc] sm:$0xf]
    %v1012 = vld [vmem:[#allocation3 + $0x1d0] sm:$0xf]
    %v1013 = vld [vmem:[#allocation3 + $0x1d4] sm:$0xf]
    %v1014 = vld [vmem:[#allocation3 + $0x1d8] sm:$0xf]
    %v1015 = vld [vmem:[#allocation3 + $0x1dc] sm:$0xf]
    %v1016 = vld [vmem:[#allocation3 + $0x1e0] sm:$0xf]
    %v1017 = vld [vmem:[#allocation3 + $0x1e4] sm:$0xf]
    %v1018 = vld [vmem:[#allocation3 + $0x1e8] sm:$0xf]
    %v1019 = vld [vmem:[#allocation3 + $0x1ec] sm:$0xf]
    %v1020 = vld [vmem:[#allocation3 + $0x1f0] sm:$0xf]
    %v1021 = vld [vmem:[#allocation3 + $0x1f4] sm:$0xf]
    %v1022 = vld [vmem:[#allocation3 + $0x1f8] sm:$0xf]
    %v1023 = vld [vmem:[#allocation3 + $0x1fc] sm:$0xf]
    %v1024 = vld [vmem:[#allocation3 + $0x200] sm:$0xf]
    %v1025 = vld [vmem:[#allocation3 + $0x204] sm:$0xf]
    %v1026 = vld [vmem:[#allocation3 + $0x208] sm:$0xf]
    %v1027 = vld [vmem:[#allocation3 + $0x20c] sm:$0xf]
    %v1028 = vld [vmem:[#allocation3 + $0x210] sm:$0xf]
    %v1029 = vld [vmem:[#allocation3 + $0x214] sm:$0xf]
    %v1030 = vld [vmem:[#allocation3 + $0x218] sm:$0xf]
    %v1031 = vld [vmem:[#allocation3 + $0x21c] sm:$0xf]
    %v1032 = vld [vmem:[#allocation3 + $0x220] sm:$0xf]
    %v1033 = vld [vmem:[#allocation3 + $0x224] sm:$0xf]
    %v1034 = vld [vmem:[#allocation3 + $0x228] sm:$0xf]
    %v1035 = vld [vmem:[#allocation3 + $0x22c] sm:$0xf]
    %v1036 = vld [vmem:[#allocation3 + $0x230] sm:$0xf]
    %v1037 = vld [vmem:[#allocation3 + $0x234] sm:$0xf]
    %v1038 = vld [vmem:[#allocation3 + $0x238] sm:$0xf]
    %v1039 = vld [vmem:[#allocation3 + $0x23c] sm:$0xf]
    %v1040 = vld [vmem:[#allocation3 + $0x240] sm:$0xf]
    %v1041 = vld [vmem:[#allocation3 + $0x244] sm:$0xf]
    %v1042 = vld [vmem:[#allocation3 + $0x248] sm:$0xf]
    %v1043 = vld [vmem:[#allocation3 + $0x24c] sm:$0xf]
    %v1044 = vld [vmem:[#allocation3 + $0x250] sm:$0xf]
    %v1045 = vld [vmem:[#allocation3 + $0x254] sm:$0xf]
    %v1046 = vld [vmem:[#allocation3 + $0x258] sm:$0xf]
    %v1047 = vld [vmem:[#allocation3 + $0x25c] sm:$0xf]
    %v1048 = vld [vmem:[#allocation3 + $0x260] sm:$0xf]
    %v1049 = vld [vmem:[#allocation3 + $0x264] sm:$0xf]
    %v1050 = vld [vmem:[#allocation3 + $0x268] sm:$0xf]
    %v1051 = vld [vmem:[#allocation3 + $0x26c] sm:$0xf]
    %v1052 = vld [vmem:[#allocation3 + $0x270] sm:$0xf]
    %v1053 = vld [vmem:[#allocation3 + $0x274] sm:$0xf]
    %v1054 = vld [vmem:[#allocation3 + $0x278] sm:$0xf]
    %v1055 = vld [vmem:[#allocation3 + $0x27c] sm:$0xf]
    %v1056 = vld [vmem:[#allocation3 + $0x280] sm:$0xf]
    %v1057 = vld [vmem:[#allocation3 + $0x284] sm:$0xf]
    %v1058 = vld [vmem:[#allocation3 + $0x288] sm:$0xf]
    %v1059 = vld [vmem:[#allocation3 + $0x28c] sm:$0xf]
    %v1060 = vld [vmem:[#allocation3 + $0x290] sm:$0xf]
    %v1061 = vld [vmem:[#allocation3 + $0x294] sm:$0xf]
    %v1062 = vld [vmem:[#allocation3 + $0x298] sm:$0xf]
    %v1063 = vld [vmem:[#allocation3 + $0x29c] sm:$0xf]
    %v1064 = vld [vmem:[#allocation3 + $0x2a0] sm:$0xf]
    %v1065 = vld [vmem:[#allocation3 + $0x2a4] sm:$0xf]
    %v1066 = vld [vmem:[#allocation3 + $0x2a8] sm:$0xf]
    %v1067 = vld [vmem:[#allocation3 + $0x2ac] sm:$0xf]
    %v1068 = vld [vmem:[#allocation3 + $0x2b0] sm:$0xf]
    %v1069 = vld [vmem:[#allocation3 + $0x2b4] sm:$0xf]
    %v1070 = vld [vmem:[#allocation3 + $0x2b8] sm:$0xf]
    %v1071 = vld [vmem:[#allocation3 + $0x2bc] sm:$0xf]
    %v1072 = vld [vmem:[#allocation3 + $0x2c0] sm:$0xf]
    %v1073 = vld [vmem:[#allocation3 + $0x2c4] sm:$0xf]
    %v1074 = vld [vmem:[#allocation3 + $0x2c8] sm:$0xf]
    %v1075 = vld [vmem:[#allocation3 + $0x2cc] sm:$0xf]
    %v1076 = vld [vmem:[#allocation3 + $0x2d0] sm:$0xf]
    %v1077 = vld [vmem:[#allocation3 + $0x2d4] sm:$0xf]
    %v1078 = vld [vmem:[#allocation3 + $0x2d8] sm:$0xf]
    %v1079 = vld [vmem:[#allocation3 + $0x2dc] sm:$0xf]
    %v1080 = vld [vmem:[#allocation3 + $0x2e0] sm:$0xf]
    %v1081 = vld [vmem:[#allocation3 + $0x2e4] sm:$0xf]
    %v1082 = vld [vmem:[#allocation3 + $0x2e8] sm:$0xf]
    %v1083 = vld [vmem:[#allocation3 + $0x2ec] sm:$0xf]
    %v1084 = vld [vmem:[#allocation3 + $0x2f0] sm:$0xf]
    %v1085 = vld [vmem:[#allocation3 + $0x2f4] sm:$0xf]
    %v1086 = vld [vmem:[#allocation3 + $0x2f8] sm:$0xf]
    %v1087 = vld [vmem:[#allocation3 + $0x2fc] sm:$0xf]
    %v1088 = vld [vmem:[#allocation3 + $0x300] sm:$0xf]
    %v1089 = vld [vmem:[#allocation3 + $0x304] sm:$0xf]
    %v1090 = vld [vmem:[#allocation3 + $0x308] sm:$0xf]
    %v1091 = vld [vmem:[#allocation3 + $0x30c] sm:$0xf]
    %v1092 = vld [vmem:[#allocation3 + $0x310] sm:$0xf]
    %v1093 = vld [vmem:[#allocation3 + $0x314] sm:$0xf]
    %v1094 = vld [vmem:[#allocation3 + $0x318] sm:$0xf]
    %v1095 = vld [vmem:[#allocation3 + $0x31c] sm:$0xf]
    %v1096 = vld [vmem:[#allocation3 + $0x320] sm:$0xf]
    %v1097 = vld [vmem:[#allocation3 + $0x324] sm:$0xf]
    %v1098 = vld [vmem:[#allocation3 + $0x328] sm:$0xf]
    %v1099 = vld [vmem:[#allocation3 + $0x32c] sm:$0xf]
    %v1100 = vld [vmem:[#allocation3 + $0x330] sm:$0xf]
    %v1101 = vld [vmem:[#allocation3 + $0x334] sm:$0xf]
    %v1102 = vld [vmem:[#allocation3 + $0x338] sm:$0xf]
    %v1103 = vld [vmem:[#allocation3 + $0x33c] sm:$0xf]
    %v1104 = vld [vmem:[#allocation3 + $0x340] sm:$0xf]
    %v1105 = vld [vmem:[#allocation3 + $0x344] sm:$0xf]
    %v1106 = vld [vmem:[#allocation3 + $0x348] sm:$0xf]
    %v1107 = vld [vmem:[#allocation3 + $0x34c] sm:$0xf]
    %v1108 = vld [vmem:[#allocation3 + $0x350] sm:$0xf]
    %v1109 = vld [vmem:[#allocation3 + $0x354] sm:$0xf]
    %v1110 = vld [vmem:[#allocation3 + $0x358] sm:$0xf]
    %v1111 = vld [vmem:[#allocation3 + $0x35c] sm:$0xf]
    %v1112 = vld [vmem:[#allocation3 + $0x360] sm:$0xf]
    %v1113 = vld [vmem:[#allocation3 + $0x364] sm:$0xf]
    %v1114 = vld [vmem:[#allocation3 + $0x368] sm:$0xf]
    %v1115 = vld [vmem:[#allocation3 + $0x36c] sm:$0xf]
    %v1116 = vld [vmem:[#allocation3 + $0x370] sm:$0xf]
    %v1117 = vld [vmem:[#allocation3 + $0x374] sm:$0xf]
    %v1118 = vld [vmem:[#allocation3 + $0x378] sm:$0xf]
    %v1119 = vld [vmem:[#allocation3 + $0x37c] sm:$0xf]
    %v1120 = vld [vmem:[#allocation3 + $0x380] sm:$0xf]
    %v1121 = vld [vmem:[#allocation3 + $0x384] sm:$0xf]
    %v1122 = vld [vmem:[#allocation3 + $0x388] sm:$0xf]
    %v1123 = vld [vmem:[#allocation3 + $0x38c] sm:$0xf]
    %v1124 = vld [vmem:[#allocation3 + $0x390] sm:$0xf]
    %v1125 = vld [vmem:[#allocation3 + $0x394] sm:$0xf]
    %v1126 = vld [vmem:[#allocation3 + $0x398] sm:$0xf]
    %v1127 = vld [vmem:[#allocation3 + $0x39c] sm:$0xf]
    %v1128 = vld [vmem:[#allocation3 + $0x3a0] sm:$0xf]
    %v1129 = vld [vmem:[#allocation3 + $0x3a4] sm:$0xf]
    %v1130 = vld [vmem:[#allocation3 + $0x3a8] sm:$0xf]
    %v1131 = vld [vmem:[#allocation3 + $0x3ac] sm:$0xf]
    %v1132 = vld [vmem:[#allocation3 + $0x3b0] sm:$0xf]
    %v1133 = vld [vmem:[#allocation3 + $0x3b4] sm:$0xf]
    %v1134 = vld [vmem:[#allocation3 + $0x3b8] sm:$0xf]
    %v1135 = vld [vmem:[#allocation3 + $0x3bc] sm:$0xf]
    %v1136 = vld [vmem:[#allocation3 + $0x3c0] sm:$0xf]
    %v1137 = vld [vmem:[#allocation3 + $0x3c4] sm:$0xf]
    %v1138 = vld [vmem:[#allocation3 + $0x3c8] sm:$0xf]
    %v1139 = vld [vmem:[#allocation3 + $0x3cc] sm:$0xf]
    %v1140 = vld [vmem:[#allocation3 + $0x3d0] sm:$0xf]
    %v1141 = vld [vmem:[#allocation3 + $0x3d4] sm:$0xf]
    %v1142 = vld [vmem:[#allocation3 + $0x3d8] sm:$0xf]
    %v1143 = vld [vmem:[#allocation3 + $0x3dc] sm:$0xf]
    %v1144 = vld [vmem:[#allocation3 + $0x3e0] sm:$0xf]
    %v1145 = vld [vmem:[#allocation3 + $0x3e4] sm:$0xf]
    %v1146 = vld [vmem:[#allocation3 + $0x3e8] sm:$0xf]
    %v1147 = vld [vmem:[#allocation3 + $0x3ec] sm:$0xf]
    %v1148 = vld [vmem:[#allocation3 + $0x3f0] sm:$0xf]
    %v1149 = vld [vmem:[#allocation3 + $0x3f4] sm:$0xf]
    %v1150 = vld [vmem:[#allocation3 + $0x3f8] sm:$0xf]
    %v1151 = vld [vmem:[#allocation3 + $0x3fc] sm:$0xf]
    %v1152 = vld [vmem:[%s4 + $0x1] sm:$0x1]
    %v1154 = vlaneseq
    %v1155 = vshrl.u32 %v1154, 7
    %v1156 = vsub.s32 0, %v1155
    %v1157 = vrot.slane %v1152, %v1156
    %v1161 = vcombine.high %v894, %v894
    %v1163 = vunpack.c.l.s4 1966171168
    %v1164 = vunpack.c.0.s8 %v1163
    %v1165 = vlaneseq
    %v1166 = vshrl.u32 %v1165, 7
    %v1167 = vsub.s32 %v1164, %v1166
    %v1168 = vrot.slane %v894, %v1167
    %v1170 = vunpack.c.l.s4 1966171168
    %v1171 = vunpack.c.0.s8 %v1170
    %v1172 = vlaneseq
    %v1173 = vshrl.u32 %v1172, 7
    %v1174 = vsub.s32 %v1171, %v1173
    %v1175 = vrot.slane %v1161, %v1174
    %v1176 = vcombine.high %v1168, %v1168
    %v1177 = vcombine.high %v1175, %v1175
    %v1179 = vunpack.c.l.s4 1966171168
    %v1180 = vunpack.c.0.s8 %v1179
    %v1181 = vlaneseq
    %v1182 = vshrl.u32 %v1181, 7
    %v1183 = vsub.s32 %v1180, %v1182
    %v1184 = vrot.slane %v1168, %v1183
    %v1186 = vunpack.c.l.s4 1966171168
    %v1187 = vunpack.c.0.s8 %v1186
    %v1188 = vlaneseq
    %v1189 = vshrl.u32 %v1188, 7
    %v1190 = vsub.s32 %v1187, %v1189
    %v1191 = vrot.slane %v1175, %v1190
    %v1193 = vunpack.c.l.s4 1966171168
    %v1194 = vunpack.c.0.s8 %v1193
    %v1195 = vlaneseq
    %v1196 = vshrl.u32 %v1195, 7
    %v1197 = vsub.s32 %v1194, %v1196
    %v1198 = vrot.slane %v1176, %v1197
    %v1200 = vunpack.c.l.s4 1966171168
    %v1201 = vunpack.c.0.s8 %v1200
    %v1202 = vlaneseq
    %v1203 = vshrl.u32 %v1202, 7
    %v1204 = vsub.s32 %v1201, %v1203
    %v1205 = vrot.slane %v1177, %v1204
    %v1206 = vcombine.high %v1184, %v1184
    %v1207 = vcombine.high %v1191, %v1191
    %v1208 = vcombine.high %v1198, %v1198
    %v1209 = vcombine.high %v1205, %v1205
    %v1210 = vcombine.high %v895, %v895
    %v1212 = vunpack.c.l.s4 1966171168
    %v1213 = vunpack.c.0.s8 %v1212
    %v1214 = vlaneseq
    %v1215 = vshrl.u32 %v1214, 7
    %v1216 = vsub.s32 %v1213, %v1215
    %v1217 = vrot.slane %v895, %v1216
    %v1219 = vunpack.c.l.s4 1966171168
    %v1220 = vunpack.c.0.s8 %v1219
    %v1221 = vlaneseq
    %v1222 = vshrl.u32 %v1221, 7
    %v1223 = vsub.s32 %v1220, %v1222
    %v1224 = vrot.slane %v1210, %v1223
    %v1225 = vcombine.high %v1217, %v1217
    %v1226 = vcombine.high %v1224, %v1224
    %v1228 = vunpack.c.l.s4 1966171168
    %v1229 = vunpack.c.0.s8 %v1228
    %v1230 = vlaneseq
    %v1231 = vshrl.u32 %v1230, 7
    %v1232 = vsub.s32 %v1229, %v1231
    %v1233 = vrot.slane %v1217, %v1232
    %v1235 = vunpack.c.l.s4 1966171168
    %v1236 = vunpack.c.0.s8 %v1235
    %v1237 = vlaneseq
    %v1238 = vshrl.u32 %v1237, 7
    %v1239 = vsub.s32 %v1236, %v1238
    %v1240 = vrot.slane %v1224, %v1239
    %v1242 = vunpack.c.l.s4 1966171168
    %v1243 = vunpack.c.0.s8 %v1242
    %v1244 = vlaneseq
    %v1245 = vshrl.u32 %v1244, 7
    %v1246 = vsub.s32 %v1243, %v1245
    %v1247 = vrot.slane %v1225, %v1246
    %v1249 = vunpack.c.l.s4 1966171168
    %v1250 = vunpack.c.0.s8 %v1249
    %v1251 = vlaneseq
    %v1252 = vshrl.u32 %v1251, 7
    %v1253 = vsub.s32 %v1250, %v1252
    %v1254 = vrot.slane %v1226, %v1253
    %v1255 = vcombine.high %v1233, %v1233
    %v1256 = vcombine.high %v1240, %v1240
    %v1257 = vcombine.high %v1247, %v1247
    %v1258 = vcombine.high %v1254, %v1254
    %v1531 = vunpack.c.l.b16 %v896
    %v1532 = vunpack.c.l.b16 %v897
    %v1533 = vunpack.c.l.b16 %v898
    %v1534 = vunpack.c.l.b16 %v899
    %v1535 = vunpack.c.l.b16 %v900
    %v1536 = vunpack.c.l.b16 %v901
    %v1537 = vunpack.c.l.b16 %v902
    %v1538 = vunpack.c.l.b16 %v903
    %v1539 = vunpack.c.l.b16 %v904
    %v1540 = vunpack.c.l.b16 %v905
    %v1541 = vunpack.c.l.b16 %v906
    %v1542 = vunpack.c.l.b16 %v907
    %v1543 = vunpack.c.l.b16 %v908
    %v1544 = vunpack.c.l.b16 %v909
    %v1545 = vunpack.c.l.b16 %v910
    %v1546 = vunpack.c.l.b16 %v911
    %v1547 = vunpack.c.l.b16 %v912
    %v1548 = vunpack.c.l.b16 %v913
    %v1549 = vunpack.c.l.b16 %v914
    %v1550 = vunpack.c.l.b16 %v915
    %v1551 = vunpack.c.l.b16 %v916
    %v1552 = vunpack.c.l.b16 %v917
    %v1553 = vunpack.c.l.b16 %v918
    %v1554 = vunpack.c.l.b16 %v919
    %v1555 = vunpack.c.l.b16 %v920
    %v1556 = vunpack.c.l.b16 %v921
    %v1557 = vunpack.c.l.b16 %v922
    %v1558 = vunpack.c.l.b16 %v923
    %v1559 = vunpack.c.l.b16 %v924
    %v1560 = vunpack.c.l.b16 %v925
    %v1561 = vunpack.c.l.b16 %v926
    %v1562 = vunpack.c.l.b16 %v927
    %v1563 = vunpack.c.l.b16 %v928
    %v1564 = vunpack.c.l.b16 %v929
    %v1565 = vunpack.c.l.b16 %v930
    %v1566 = vunpack.c.l.b16 %v931
    %v1567 = vunpack.c.l.b16 %v932
    %v1568 = vunpack.c.l.b16 %v933
    %v1569 = vunpack.c.l.b16 %v934
    %v1570 = vunpack.c.l.b16 %v935
    %v1571 = vunpack.c.l.b16 %v936
    %v1572 = vunpack.c.l.b16 %v937
    %v1573 = vunpack.c.l.b16 %v938
    %v1574 = vunpack.c.l.b16 %v939
    %v1575 = vunpack.c.l.b16 %v940
    %v1576 = vunpack.c.l.b16 %v941
    %v1577 = vunpack.c.l.b16 %v942
    %v1578 = vunpack.c.l.b16 %v943
    %v1579 = vunpack.c.l.b16 %v944
    %v1580 = vunpack.c.l.b16 %v945
    %v1581 = vunpack.c.l.b16 %v946
    %v1582 = vunpack.c.l.b16 %v947
    %v1583 = vunpack.c.l.b16 %v948
    %v1584 = vunpack.c.l.b16 %v949
    %v1585 = vunpack.c.l.b16 %v950
    %v1586 = vunpack.c.l.b16 %v951
    %v1587 = vunpack.c.l.b16 %v952
    %v1588 = vunpack.c.l.b16 %v953
    %v1589 = vunpack.c.l.b16 %v954
    %v1590 = vunpack.c.l.b16 %v955
    %v1591 = vunpack.c.l.b16 %v956
    %v1592 = vunpack.c.l.b16 %v957
    %v1593 = vunpack.c.l.b16 %v958
    %v1594 = vunpack.c.l.b16 %v959
    %v1595 = vunpack.c.l.b16 %v960
    %v1596 = vunpack.c.l.b16 %v961
    %v1597 = vunpack.c.l.b16 %v962
    %v1598 = vunpack.c.l.b16 %v963
    %v1599 = vunpack.c.l.b16 %v964
    %v1600 = vunpack.c.l.b16 %v965
    %v1601 = vunpack.c.l.b16 %v966
    %v1602 = vunpack.c.l.b16 %v967
    %v1603 = vunpack.c.l.b16 %v968
    %v1604 = vunpack.c.l.b16 %v969
    %v1605 = vunpack.c.l.b16 %v970
    %v1606 = vunpack.c.l.b16 %v971
    %v1607 = vunpack.c.l.b16 %v972
    %v1608 = vunpack.c.l.b16 %v973
    %v1609 = vunpack.c.l.b16 %v974
    %v1610 = vunpack.c.l.b16 %v975
    %v1611 = vunpack.c.l.b16 %v976
    %v1612 = vunpack.c.l.b16 %v977
    %v1613 = vunpack.c.l.b16 %v978
    %v1614 = vunpack.c.l.b16 %v979
    %v1615 = vunpack.c.l.b16 %v980
    %v1616 = vunpack.c.l.b16 %v981
    %v1617 = vunpack.c.l.b16 %v982
    %v1618 = vunpack.c.l.b16 %v983
    %v1619 = vunpack.c.l.b16 %v984
    %v1620 = vunpack.c.l.b16 %v985
    %v1621 = vunpack.c.l.b16 %v986
    %v1622 = vunpack.c.l.b16 %v987
    %v1623 = vunpack.c.l.b16 %v988
    %v1624 = vunpack.c.l.b16 %v989
    %v1625 = vunpack.c.l.b16 %v990
    %v1626 = vunpack.c.l.b16 %v991
    %v1627 = vunpack.c.l.b16 %v992
    %v1628 = vunpack.c.l.b16 %v993
    %v1629 = vunpack.c.l.b16 %v994
    %v1630 = vunpack.c.l.b16 %v995
    %v1631 = vunpack.c.l.b16 %v996
    %v1632 = vunpack.c.l.b16 %v997
    %v1633 = vunpack.c.l.b16 %v998
    %v1634 = vunpack.c.l.b16 %v999
    %v1635 = vunpack.c.l.b16 %v1000
    %v1636 = vunpack.c.l.b16 %v1001
    %v1637 = vunpack.c.l.b16 %v1002
    %v1638 = vunpack.c.l.b16 %v1003
    %v1639 = vunpack.c.l.b16 %v1004
    %v1640 = vunpack.c.l.b16 %v1005
    %v1641 = vunpack.c.l.b16 %v1006
    %v1642 = vunpack.c.l.b16 %v1007
    %v1643 = vunpack.c.l.b16 %v1008
    %v1644 = vunpack.c.l.b16 %v1009
    %v1645 = vunpack.c.l.b16 %v1010
    %v1646 = vunpack.c.l.b16 %v1011
    %v1647 = vunpack.c.l.b16 %v1012
    %v1648 = vunpack.c.l.b16 %v1013
    %v1649 = vunpack.c.l.b16 %v1014
    %v1650 = vunpack.c.l.b16 %v1015
    %v1651 = vunpack.c.l.b16 %v1016
    %v1652 = vunpack.c.l.b16 %v1017
    %v1653 = vunpack.c.l.b16 %v1018
    %v1654 = vunpack.c.l.b16 %v1019
    %v1655 = vunpack.c.l.b16 %v1020
    %v1656 = vunpack.c.l.b16 %v1021
    %v1657 = vunpack.c.l.b16 %v1022
    %v1658 = vunpack.c.l.b16 %v1023
    %v1659 = vunpack.c.l.b16 %v1024
    %v1660 = vunpack.c.l.b16 %v1025
    %v1661 = vunpack.c.l.b16 %v1026
    %v1662 = vunpack.c.l.b16 %v1027
    %v1663 = vunpack.c.l.b16 %v1028
    %v1664 = vunpack.c.l.b16 %v1029
    %v1665 = vunpack.c.l.b16 %v1030
    %v1666 = vunpack.c.l.b16 %v1031
    %v1667 = vunpack.c.l.b16 %v1032
    %v1668 = vunpack.c.l.b16 %v1033
    %v1669 = vunpack.c.l.b16 %v1034
    %v1670 = vunpack.c.l.b16 %v1035
    %v1671 = vunpack.c.l.b16 %v1036
    %v1672 = vunpack.c.l.b16 %v1037
    %v1673 = vunpack.c.l.b16 %v1038
    %v1674 = vunpack.c.l.b16 %v1039
    %v1675 = vunpack.c.l.b16 %v1040
    %v1676 = vunpack.c.l.b16 %v1041
    %v1677 = vunpack.c.l.b16 %v1042
    %v1678 = vunpack.c.l.b16 %v1043
    %v1679 = vunpack.c.l.b16 %v1044
    %v1680 = vunpack.c.l.b16 %v1045
    %v1681 = vunpack.c.l.b16 %v1046
    %v1682 = vunpack.c.l.b16 %v1047
    %v1683 = vunpack.c.l.b16 %v1048
    %v1684 = vunpack.c.l.b16 %v1049
    %v1685 = vunpack.c.l.b16 %v1050
    %v1686 = vunpack.c.l.b16 %v1051
    %v1687 = vunpack.c.l.b16 %v1052
    %v1688 = vunpack.c.l.b16 %v1053
    %v1689 = vunpack.c.l.b16 %v1054
    %v1690 = vunpack.c.l.b16 %v1055
    %v1691 = vunpack.c.l.b16 %v1056
    %v1692 = vunpack.c.l.b16 %v1057
    %v1693 = vunpack.c.l.b16 %v1058
    %v1694 = vunpack.c.l.b16 %v1059
    %v1695 = vunpack.c.l.b16 %v1060
    %v1696 = vunpack.c.l.b16 %v1061
    %v1697 = vunpack.c.l.b16 %v1062
    %v1698 = vunpack.c.l.b16 %v1063
    %v1699 = vunpack.c.l.b16 %v1064
    %v1700 = vunpack.c.l.b16 %v1065
    %v1701 = vunpack.c.l.b16 %v1066
    %v1702 = vunpack.c.l.b16 %v1067
    %v1703 = vunpack.c.l.b16 %v1068
    %v1704 = vunpack.c.l.b16 %v1069
    %v1705 = vunpack.c.l.b16 %v1070
    %v1706 = vunpack.c.l.b16 %v1071
    %v1707 = vunpack.c.l.b16 %v1072
    %v1708 = vunpack.c.l.b16 %v1073
    %v1709 = vunpack.c.l.b16 %v1074
    %v1710 = vunpack.c.l.b16 %v1075
    %v1711 = vunpack.c.l.b16 %v1076
    %v1712 = vunpack.c.l.b16 %v1077
    %v1713 = vunpack.c.l.b16 %v1078
    %v1714 = vunpack.c.l.b16 %v1079
    %v1715 = vunpack.c.l.b16 %v1080
    %v1716 = vunpack.c.l.b16 %v1081
    %v1717 = vunpack.c.l.b16 %v1082
    %v1718 = vunpack.c.l.b16 %v1083
    %v1719 = vunpack.c.l.b16 %v1084
    %v1720 = vunpack.c.l.b16 %v1085
    %v1721 = vunpack.c.l.b16 %v1086
    %v1722 = vunpack.c.l.b16 %v1087
    %v1723 = vunpack.c.l.b16 %v1088
    %v1724 = vunpack.c.l.b16 %v1089
    %v1725 = vunpack.c.l.b16 %v1090
    %v1726 = vunpack.c.l.b16 %v1091
    %v1727 = vunpack.c.l.b16 %v1092
    %v1728 = vunpack.c.l.b16 %v1093
    %v1729 = vunpack.c.l.b16 %v1094
    %v1730 = vunpack.c.l.b16 %v1095
    %v1731 = vunpack.c.l.b16 %v1096
    %v1732 = vunpack.c.l.b16 %v1097
    %v1733 = vunpack.c.l.b16 %v1098
    %v1734 = vunpack.c.l.b16 %v1099
    %v1735 = vunpack.c.l.b16 %v1100
    %v1736 = vunpack.c.l.b16 %v1101
    %v1737 = vunpack.c.l.b16 %v1102
    %v1738 = vunpack.c.l.b16 %v1103
    %v1739 = vunpack.c.l.b16 %v1104
    %v1740 = vunpack.c.l.b16 %v1105
    %v1741 = vunpack.c.l.b16 %v1106
    %v1742 = vunpack.c.l.b16 %v1107
    %v1743 = vunpack.c.l.b16 %v1108
    %v1744 = vunpack.c.l.b16 %v1109
    %v1745 = vunpack.c.l.b16 %v1110
    %v1746 = vunpack.c.l.b16 %v1111
    %v1747 = vunpack.c.l.b16 %v1112
    %v1748 = vunpack.c.l.b16 %v1113
    %v1749 = vunpack.c.l.b16 %v1114
    %v1750 = vunpack.c.l.b16 %v1115
    %v1751 = vunpack.c.l.b16 %v1116
    %v1752 = vunpack.c.l.b16 %v1117
    %v1753 = vunpack.c.l.b16 %v1118
    %v1754 = vunpack.c.l.b16 %v1119
    %v1755 = vunpack.c.l.b16 %v1120
    %v1756 = vunpack.c.l.b16 %v1121
    %v1757 = vunpack.c.l.b16 %v1122
    %v1758 = vunpack.c.l.b16 %v1123
    %v1759 = vunpack.c.l.b16 %v1124
    %v1760 = vunpack.c.l.b16 %v1125
    %v1761 = vunpack.c.l.b16 %v1126
    %v1762 = vunpack.c.l.b16 %v1127
    %v1763 = vunpack.c.l.b16 %v1128
    %v1764 = vunpack.c.l.b16 %v1129
    %v1765 = vunpack.c.l.b16 %v1130
    %v1766 = vunpack.c.l.b16 %v1131
    %v1767 = vunpack.c.l.b16 %v1132
    %v1768 = vunpack.c.l.b16 %v1133
    %v1769 = vunpack.c.l.b16 %v1134
    %v1770 = vunpack.c.l.b16 %v1135
    %v1771 = vunpack.c.l.b16 %v1136
    %v1772 = vunpack.c.l.b16 %v1137
    %v1773 = vunpack.c.l.b16 %v1138
    %v1774 = vunpack.c.l.b16 %v1139
    %v1775 = vunpack.c.l.b16 %v1140
    %v1776 = vunpack.c.l.b16 %v1141
    %v1777 = vunpack.c.l.b16 %v1142
    %v1778 = vunpack.c.l.b16 %v1143
    %v1779 = vunpack.c.l.b16 %v1144
    %v1780 = vunpack.c.l.b16 %v1145
    %v1781 = vunpack.c.l.b16 %v1146
    %v1782 = vunpack.c.l.b16 %v1147
    %v1783 = vunpack.c.l.b16 %v1148
    %v1784 = vunpack.c.l.b16 %v1149
    %v1785 = vunpack.c.l.b16 %v1150
    %v1786 = vunpack.c.l.b16 %v1151
    %v1787 = vpack.c.b16 %v1532, %v1531
    %v1788 = vpack.c.b16 %v1534, %v1533
    %v1789 = vpack.c.b16 %v1536, %v1535
    %v1790 = vpack.c.b16 %v1538, %v1537
    %v1791 = vpack.c.b16 %v1540, %v1539
    %v1792 = vpack.c.b16 %v1542, %v1541
    %v1793 = vpack.c.b16 %v1544, %v1543
    %v1794 = vpack.c.b16 %v1546, %v1545
    %v1795 = vpack.c.b16 %v1548, %v1547
    %v1796 = vpack.c.b16 %v1550, %v1549
    %v1797 = vpack.c.b16 %v1552, %v1551
    %v1798 = vpack.c.b16 %v1554, %v1553
    %v1799 = vpack.c.b16 %v1556, %v1555
    %v1800 = vpack.c.b16 %v1558, %v1557
    %v1801 = vpack.c.b16 %v1560, %v1559
    %v1802 = vpack.c.b16 %v1562, %v1561
    %v1803 = vpack.c.b16 %v1564, %v1563
    %v1804 = vpack.c.b16 %v1566, %v1565
    %v1805 = vpack.c.b16 %v1568, %v1567
    %v1806 = vpack.c.b16 %v1570, %v1569
    %v1807 = vpack.c.b16 %v1572, %v1571
    %v1808 = vpack.c.b16 %v1574, %v1573
    %v1809 = vpack.c.b16 %v1576, %v1575
    %v1810 = vpack.c.b16 %v1578, %v1577
    %v1811 = vpack.c.b16 %v1580, %v1579
    %v1812 = vpack.c.b16 %v1582, %v1581
    %v1813 = vpack.c.b16 %v1584, %v1583
    %v1814 = vpack.c.b16 %v1586, %v1585
    %v1815 = vpack.c.b16 %v1588, %v1587
    %v1816 = vpack.c.b16 %v1590, %v1589
    %v1817 = vpack.c.b16 %v1592, %v1591
    %v1818 = vpack.c.b16 %v1594, %v1593
    %v1819 = vpack.c.b16 %v1596, %v1595
    %v1820 = vpack.c.b16 %v1598, %v1597
    %v1821 = vpack.c.b16 %v1600, %v1599
    %v1822 = vpack.c.b16 %v1602, %v1601
    %v1823 = vpack.c.b16 %v1604, %v1603
    %v1824 = vpack.c.b16 %v1606, %v1605
    %v1825 = vpack.c.b16 %v1608, %v1607
    %v1826 = vpack.c.b16 %v1610, %v1609
    %v1827 = vpack.c.b16 %v1612, %v1611
    %v1828 = vpack.c.b16 %v1614, %v1613
    %v1829 = vpack.c.b16 %v1616, %v1615
    %v1830 = vpack.c.b16 %v1618, %v1617
    %v1831 = vpack.c.b16 %v1620, %v1619
    %v1832 = vpack.c.b16 %v1622, %v1621
    %v1833 = vpack.c.b16 %v1624, %v1623
    %v1834 = vpack.c.b16 %v1626, %v1625
    %v1835 = vpack.c.b16 %v1628, %v1627
    %v1836 = vpack.c.b16 %v1630, %v1629
    %v1837 = vpack.c.b16 %v1632, %v1631
    %v1838 = vpack.c.b16 %v1634, %v1633
    %v1839 = vpack.c.b16 %v1636, %v1635
    %v1840 = vpack.c.b16 %v1638, %v1637
    %v1841 = vpack.c.b16 %v1640, %v1639
    %v1842 = vpack.c.b16 %v1642, %v1641
    %v1843 = vpack.c.b16 %v1644, %v1643
    %v1844 = vpack.c.b16 %v1646, %v1645
    %v1845 = vpack.c.b16 %v1648, %v1647
    %v1846 = vpack.c.b16 %v1650, %v1649
    %v1847 = vpack.c.b16 %v1652, %v1651
    %v1848 = vpack.c.b16 %v1654, %v1653
    %v1849 = vpack.c.b16 %v1656, %v1655
    %v1850 = vpack.c.b16 %v1658, %v1657
    %v1851 = vpack.c.b16 %v1660, %v1659
    %v1852 = vpack.c.b16 %v1662, %v1661
    %v1853 = vpack.c.b16 %v1664, %v1663
    %v1854 = vpack.c.b16 %v1666, %v1665
    %v1855 = vpack.c.b16 %v1668, %v1667
    %v1856 = vpack.c.b16 %v1670, %v1669
    %v1857 = vpack.c.b16 %v1672, %v1671
    %v1858 = vpack.c.b16 %v1674, %v1673
    %v1859 = vpack.c.b16 %v1676, %v1675
    %v1860 = vpack.c.b16 %v1678, %v1677
    %v1861 = vpack.c.b16 %v1680, %v1679
    %v1862 = vpack.c.b16 %v1682, %v1681
    %v1863 = vpack.c.b16 %v1684, %v1683
    %v1864 = vpack.c.b16 %v1686, %v1685
    %v1865 = vpack.c.b16 %v1688, %v1687
    %v1866 = vpack.c.b16 %v1690, %v1689
    %v1867 = vpack.c.b16 %v1692, %v1691
    %v1868 = vpack.c.b16 %v1694, %v1693
    %v1869 = vpack.c.b16 %v1696, %v1695
    %v1870 = vpack.c.b16 %v1698, %v1697
    %v1871 = vpack.c.b16 %v1700, %v1699
    %v1872 = vpack.c.b16 %v1702, %v1701
    %v1873 = vpack.c.b16 %v1704, %v1703
    %v1874 = vpack.c.b16 %v1706, %v1705
    %v1875 = vpack.c.b16 %v1708, %v1707
    %v1876 = vpack.c.b16 %v1710, %v1709
    %v1877 = vpack.c.b16 %v1712, %v1711
    %v1878 = vpack.c.b16 %v1714, %v1713
    %v1879 = vpack.c.b16 %v1716, %v1715
    %v1880 = vpack.c.b16 %v1718, %v1717
    %v1881 = vpack.c.b16 %v1720, %v1719
    %v1882 = vpack.c.b16 %v1722, %v1721
    %v1883 = vpack.c.b16 %v1724, %v1723
    %v1884 = vpack.c.b16 %v1726, %v1725
    %v1885 = vpack.c.b16 %v1728, %v1727
    %v1886 = vpack.c.b16 %v1730, %v1729
    %v1887 = vpack.c.b16 %v1732, %v1731
    %v1888 = vpack.c.b16 %v1734, %v1733
    %v1889 = vpack.c.b16 %v1736, %v1735
    %v1890 = vpack.c.b16 %v1738, %v1737
    %v1891 = vpack.c.b16 %v1740, %v1739
    %v1892 = vpack.c.b16 %v1742, %v1741
    %v1893 = vpack.c.b16 %v1744, %v1743
    %v1894 = vpack.c.b16 %v1746, %v1745
    %v1895 = vpack.c.b16 %v1748, %v1747
    %v1896 = vpack.c.b16 %v1750, %v1749
    %v1897 = vpack.c.b16 %v1752, %v1751
    %v1898 = vpack.c.b16 %v1754, %v1753
    %v1899 = vpack.c.b16 %v1756, %v1755
    %v1900 = vpack.c.b16 %v1758, %v1757
    %v1901 = vpack.c.b16 %v1760, %v1759
    %v1902 = vpack.c.b16 %v1762, %v1761
    %v1903 = vpack.c.b16 %v1764, %v1763
    %v1904 = vpack.c.b16 %v1766, %v1765
    %v1905 = vpack.c.b16 %v1768, %v1767
    %v1906 = vpack.c.b16 %v1770, %v1769
    %v1907 = vpack.c.b16 %v1772, %v1771
    %v1908 = vpack.c.b16 %v1774, %v1773
    %v1909 = vpack.c.b16 %v1776, %v1775
    %v1910 = vpack.c.b16 %v1778, %v1777
    %v1911 = vpack.c.b16 %v1780, %v1779
    %v1912 = vpack.c.b16 %v1782, %v1781
    %v1913 = vpack.c.b16 %v1784, %v1783
    %v1914 = vpack.c.b16 %v1786, %v1785
    %2043 = vmatprep.subr.bf16.mxu0 0
    %2044 = vmatpush1.bf16.msra.mxu0 %v1787
    %2045 = vmatprep.subr.bf16.mxu0 0
    %2046 = vmatpush1.bf16.msra.mxu0 %v1788
    %2047 = vmatprep.subr.bf16.mxu0 0
    %2048 = vmatpush1.bf16.msra.mxu0 %v1789
    %2049 = vmatprep.subr.bf16.mxu0 0
    %2050 = vmatpush1.bf16.msra.mxu0 %v1790
    %2051 = vmatprep.subr.bf16.mxu0 0
    %2052 = vmatpush1.bf16.msra.mxu0 %v1791
    %2053 = vmatprep.subr.bf16.mxu0 0
    %2054 = vmatpush1.bf16.msra.mxu0 %v1792
    %2055 = vmatprep.subr.bf16.mxu0 0
    %2056 = vmatpush1.bf16.msra.mxu0 %v1793
    %2057 = vmatprep.subr.bf16.mxu0 0
    %2058 = vmatpush1.bf16.msra.mxu0 %v1794
    %2059 = vmatprep.subr.bf16.mxu0 0
    %2060 = vmatpush1.bf16.msra.mxu0 %v1795
    %2061 = vmatprep.subr.bf16.mxu0 0
    %2062 = vmatpush1.bf16.msra.mxu0 %v1796
    %2063 = vmatprep.subr.bf16.mxu0 0
    %2064 = vmatpush1.bf16.msra.mxu0 %v1797
    %2065 = vmatprep.subr.bf16.mxu0 0
    %2066 = vmatpush1.bf16.msra.mxu0 %v1798
    %2067 = vmatprep.subr.bf16.mxu0 0
    %2068 = vmatpush1.bf16.msra.mxu0 %v1799
    %2069 = vmatprep.subr.bf16.mxu0 0
    %2070 = vmatpush1.bf16.msra.mxu0 %v1800
    %2071 = vmatprep.subr.bf16.mxu0 0
    %2072 = vmatpush1.bf16.msra.mxu0 %v1801
    %2073 = vmatprep.subr.bf16.mxu0 0
    %2074 = vmatpush1.bf16.msra.mxu0 %v1802
    %2075 = vmatprep.mubr.bf16.mxu0 %v1198
    %2076 = vmatmul.mubr.bf16.gmra.mrb[0].mxu0 %v1184
    %v2077 = vpop.f32.mrb[0].mxu0
    %v2078 = vadd.f32 %v1157, %v2077
    %v2079 = vpop.f32.mrb[0].mxu0
    %v2080 = vpop.f32.mrb[0].mxu0
    %v2081 = vpop.f32.mrb[0].mxu0
    %2082 = vdwg.mxu0
    %2083 = vmatprep.subr.bf16.mxu0 0
    %2084 = vmatpush1.bf16.msra.mxu0 %v1803
    %2085 = vmatprep.subr.bf16.mxu0 0
    %2086 = vmatpush1.bf16.msra.mxu0 %v1804
    %2087 = vmatprep.subr.bf16.mxu0 0
    %2088 = vmatpush1.bf16.msra.mxu0 %v1805
    %2089 = vmatprep.subr.bf16.mxu0 0
    %2090 = vmatpush1.bf16.msra.mxu0 %v1806
    %2091 = vmatprep.subr.bf16.mxu0 0
    %2092 = vmatpush1.bf16.msra.mxu0 %v1807
    %2093 = vmatprep.subr.bf16.mxu0 0
    %2094 = vmatpush1.bf16.msra.mxu0 %v1808
    %2095 = vmatprep.subr.bf16.mxu0 0
    %2096 = vmatpush1.bf16.msra.mxu0 %v1809
    %2097 = vmatprep.subr.bf16.mxu0 0
    %2098 = vmatpush1.bf16.msra.mxu0 %v1810
    %2099 = vmatprep.subr.bf16.mxu0 0
    %2100 = vmatpush1.bf16.msra.mxu0 %v1811
    %2101 = vmatprep.subr.bf16.mxu0 0
    %2102 = vmatpush1.bf16.msra.mxu0 %v1812
    %2103 = vmatprep.subr.bf16.mxu0 0
    %2104 = vmatpush1.bf16.msra.mxu0 %v1813
    %2105 = vmatprep.subr.bf16.mxu0 0
    %2106 = vmatpush1.bf16.msra.mxu0 %v1814
    %2107 = vmatprep.subr.bf16.mxu0 0
    %2108 = vmatpush1.bf16.msra.mxu0 %v1815
    %2109 = vmatprep.subr.bf16.mxu0 0
    %2110 = vmatpush1.bf16.msra.mxu0 %v1816
    %2111 = vmatprep.subr.bf16.mxu0 0
    %2112 = vmatpush1.bf16.msra.mxu0 %v1817
    %2113 = vmatprep.subr.bf16.mxu0 0
    %2114 = vmatpush1.bf16.msra.mxu0 %v1818
    %2115 = vmatprep.mubr.bf16.mxu0 %v1208
    %2116 = vmatmul.mubr.bf16.gmra.mrb[0].mxu0 %v1206
    %v2117 = vpop.f32.mrb[0].mxu0
    %v2118 = vadd.f32 %v2078, %v2117
    %v2119 = vpop.f32.mrb[0].mxu0
    %v2120 = vpop.f32.mrb[0].mxu0
    %v2121 = vpop.f32.mrb[0].mxu0
    %2122 = vdwg.mxu0
    %2123 = vmatprep.subr.bf16.mxu0 0
    %2124 = vmatpush1.bf16.msra.mxu0 %v1819
    %2125 = vmatprep.subr.bf16.mxu0 0
    %2126 = vmatpush1.bf16.msra.mxu0 %v1820
    %2127 = vmatprep.subr.bf16.mxu0 0
    %2128 = vmatpush1.bf16.msra.mxu0 %v1821
    %2129 = vmatprep.subr.bf16.mxu0 0
    %2130 = vmatpush1.bf16.msra.mxu0 %v1822
    %2131 = vmatprep.subr.bf16.mxu0 0
    %2132 = vmatpush1.bf16.msra.mxu0 %v1823
    %2133 = vmatprep.subr.bf16.mxu0 0
    %2134 = vmatpush1.bf16.msra.mxu0 %v1824
    %2135 = vmatprep.subr.bf16.mxu0 0
    %2136 = vmatpush1.bf16.msra.mxu0 %v1825
    %2137 = vmatprep.subr.bf16.mxu0 0
    %2138 = vmatpush1.bf16.msra.mxu0 %v1826
    %2139 = vmatprep.subr.bf16.mxu0 0
    %2140 = vmatpush1.bf16.msra.mxu0 %v1827
    %2141 = vmatprep.subr.bf16.mxu0 0
    %2142 = vmatpush1.bf16.msra.mxu0 %v1828
    %2143 = vmatprep.subr.bf16.mxu0 0
    %2144 = vmatpush1.bf16.msra.mxu0 %v1829
    %2145 = vmatprep.subr.bf16.mxu0 0
    %2146 = vmatpush1.bf16.msra.mxu0 %v1830
    %2147 = vmatprep.subr.bf16.mxu0 0
    %2148 = vmatpush1.bf16.msra.mxu0 %v1831
    %2149 = vmatprep.subr.bf16.mxu0 0
    %2150 = vmatpush1.bf16.msra.mxu0 %v1832
    %2151 = vmatprep.subr.bf16.mxu0 0
    %2152 = vmatpush1.bf16.msra.mxu0 %v1833
    %2153 = vmatprep.subr.bf16.mxu0 0
    %2154 = vmatpush1.bf16.msra.mxu0 %v1834
    %2155 = vmatprep.mubr.bf16.mxu0 %v1205
    %2156 = vmatmul.mubr.bf16.gmra.mrb[0].mxu0 %v1191
    %v2157 = vpop.f32.mrb[0].mxu0
    %v2158 = vadd.f32 %v2118, %v2157
    %v2159 = vpop.f32.mrb[0].mxu0
    %v2160 = vpop.f32.mrb[0].mxu0
    %v2161 = vpop.f32.mrb[0].mxu0
    %2162 = vdwg.mxu0
    %2163 = vmatprep.subr.bf16.mxu0 0
    %2164 = vmatpush1.bf16.msra.mxu0 %v1835
    %2165 = vmatprep.subr.bf16.mxu0 0
    %2166 = vmatpush1.bf16.msra.mxu0 %v1836
    %2167 = vmatprep.subr.bf16.mxu0 0
    %2168 = vmatpush1.bf16.msra.mxu0 %v1837
    %2169 = vmatprep.subr.bf16.mxu0 0
    %2170 = vmatpush1.bf16.msra.mxu0 %v1838
    %2171 = vmatprep.subr.bf16.mxu0 0
    %2172 = vmatpush1.bf16.msra.mxu0 %v1839
    %2173 = vmatprep.subr.bf16.mxu0 0
    %2174 = vmatpush1.bf16.msra.mxu0 %v1840
    %2175 = vmatprep.subr.bf16.mxu0 0
    %2176 = vmatpush1.bf16.msra.mxu0 %v1841
    %2177 = vmatprep.subr.bf16.mxu0 0
    %2178 = vmatpush1.bf16.msra.mxu0 %v1842
    %2179 = vmatprep.subr.bf16.mxu0 0
    %2180 = vmatpush1.bf16.msra.mxu0 %v1843
    %2181 = vmatprep.subr.bf16.mxu0 0
    %2182 = vmatpush1.bf16.msra.mxu0 %v1844
    %2183 = vmatprep.subr.bf16.mxu0 0
    %2184 = vmatpush1.bf16.msra.mxu0 %v1845
    %2185 = vmatprep.subr.bf16.mxu0 0
    %2186 = vmatpush1.bf16.msra.mxu0 %v1846
    %2187 = vmatprep.subr.bf16.mxu0 0
    %2188 = vmatpush1.bf16.msra.mxu0 %v1847
    %2189 = vmatprep.subr.bf16.mxu0 0
    %2190 = vmatpush1.bf16.msra.mxu0 %v1848
    %2191 = vmatprep.subr.bf16.mxu0 0
    %2192 = vmatpush1.bf16.msra.mxu0 %v1849
    %2193 = vmatprep.subr.bf16.mxu0 0
    %2194 = vmatpush1.bf16.msra.mxu0 %v1850
    %2195 = vmatprep.mubr.bf16.mxu0 %v1209
    %2196 = vmatmul.mubr.bf16.gmra.mrb[0].mxu0 %v1207
    %v2197 = vpop.f32.mrb[0].mxu0
    %v2198 = vadd.f32 %v2158, %v2197
    %v2199 = vpop.f32.mrb[0].mxu0
    %v2200 = vpop.f32.mrb[0].mxu0
    %v2201 = vpop.f32.mrb[0].mxu0
    %2202 = vdwg.mxu0
    %2203 = vmatprep.subr.bf16.mxu0 0
    %2204 = vmatpush1.bf16.msra.mxu0 %v1851
    %2205 = vmatprep.subr.bf16.mxu0 0
    %2206 = vmatpush1.bf16.msra.mxu0 %v1852
    %2207 = vmatprep.subr.bf16.mxu0 0
    %2208 = vmatpush1.bf16.msra.mxu0 %v1853
    %2209 = vmatprep.subr.bf16.mxu0 0
    %2210 = vmatpush1.bf16.msra.mxu0 %v1854
    %2211 = vmatprep.subr.bf16.mxu0 0
    %2212 = vmatpush1.bf16.msra.mxu0 %v1855
    %2213 = vmatprep.subr.bf16.mxu0 0
    %2214 = vmatpush1.bf16.msra.mxu0 %v1856
    %2215 = vmatprep.subr.bf16.mxu0 0
    %2216 = vmatpush1.bf16.msra.mxu0 %v1857
    %2217 = vmatprep.subr.bf16.mxu0 0
    %2218 = vmatpush1.bf16.msra.mxu0 %v1858
    %2219 = vmatprep.subr.bf16.mxu0 0
    %2220 = vmatpush1.bf16.msra.mxu0 %v1859
    %2221 = vmatprep.subr.bf16.mxu0 0
    %2222 = vmatpush1.bf16.msra.mxu0 %v1860
    %2223 = vmatprep.subr.bf16.mxu0 0
    %2224 = vmatpush1.bf16.msra.mxu0 %v1861
    %2225 = vmatprep.subr.bf16.mxu0 0
    %2226 = vmatpush1.bf16.msra.mxu0 %v1862
    %2227 = vmatprep.subr.bf16.mxu0 0
    %2228 = vmatpush1.bf16.msra.mxu0 %v1863
    %2229 = vmatprep.subr.bf16.mxu0 0
    %2230 = vmatpush1.bf16.msra.mxu0 %v1864
    %2231 = vmatprep.subr.bf16.mxu0 0
    %2232 = vmatpush1.bf16.msra.mxu0 %v1865
    %2233 = vmatprep.subr.bf16.mxu0 0
    %2234 = vmatpush1.bf16.msra.mxu0 %v1866
    %2235 = vmatprep.mubr.bf16.mxu0 %v1247
    %2236 = vmatmul.mubr.bf16.gmra.mrb[0].mxu0 %v1233
    %v2237 = vpop.f32.mrb[0].mxu0
    %v2238 = vadd.f32 %v2198, %v2237
    %v2239 = vpop.f32.mrb[0].mxu0
    %v2240 = vpop.f32.mrb[0].mxu0
    %v2241 = vpop.f32.mrb[0].mxu0
    %2242 = vdwg.mxu0
    %2243 = vmatprep.subr.bf16.mxu0 0
    %2244 = vmatpush1.bf16.msra.mxu0 %v1867
    %2245 = vmatprep.subr.bf16.mxu0 0
    %2246 = vmatpush1.bf16.msra.mxu0 %v1868
    %2247 = vmatprep.subr.bf16.mxu0 0
    %2248 = vmatpush1.bf16.msra.mxu0 %v1869
    %2249 = vmatprep.subr.bf16.mxu0 0
    %2250 = vmatpush1.bf16.msra.mxu0 %v1870
    %2251 = vmatprep.subr.bf16.mxu0 0
    %2252 = vmatpush1.bf16.msra.mxu0 %v1871
    %2253 = vmatprep.subr.bf16.mxu0 0
    %2254 = vmatpush1.bf16.msra.mxu0 %v1872
    %2255 = vmatprep.subr.bf16.mxu0 0
    %2256 = vmatpush1.bf16.msra.mxu0 %v1873
    %2257 = vmatprep.subr.bf16.mxu0 0
    %2258 = vmatpush1.bf16.msra.mxu0 %v1874
    %2259 = vmatprep.subr.bf16.mxu0 0
    %2260 = vmatpush1.bf16.msra.mxu0 %v1875
    %2261 = vmatprep.subr.bf16.mxu0 0
    %2262 = vmatpush1.bf16.msra.mxu0 %v1876
    %2263 = vmatprep.subr.bf16.mxu0 0
    %2264 = vmatpush1.bf16.msra.mxu0 %v1877
    %2265 = vmatprep.subr.bf16.mxu0 0
    %2266 = vmatpush1.bf16.msra.mxu0 %v1878
    %2267 = vmatprep.subr.bf16.mxu0 0
    %2268 = vmatpush1.bf16.msra.mxu0 %v1879
    %2269 = vmatprep.subr.bf16.mxu0 0
    %2270 = vmatpush1.bf16.msra.mxu0 %v1880
    %2271 = vmatprep.subr.bf16.mxu0 0
    %2272 = vmatpush1.bf16.msra.mxu0 %v1881
    %2273 = vmatprep.subr.bf16.mxu0 0
    %2274 = vmatpush1.bf16.msra.mxu0 %v1882
    %2275 = vmatprep.mubr.bf16.mxu0 %v1257
    %2276 = vmatmul.mubr.bf16.gmra.mrb[0].mxu0 %v1255
    %v2277 = vpop.f32.mrb[0].mxu0
    %v2278 = vadd.f32 %v2238, %v2277
    %v2279 = vpop.f32.mrb[0].mxu0
    %v2280 = vpop.f32.mrb[0].mxu0
    %v2281 = vpop.f32.mrb[0].mxu0
    %2282 = vdwg.mxu0
    %2283 = vmatprep.subr.bf16.mxu0 0
    %2284 = vmatpush1.bf16.msra.mxu0 %v1883
    %2285 = vmatprep.subr.bf16.mxu0 0
    %2286 = vmatpush1.bf16.msra.mxu0 %v1884
    %2287 = vmatprep.subr.bf16.mxu0 0
    %2288 = vmatpush1.bf16.msra.mxu0 %v1885
    %2289 = vmatprep.subr.bf16.mxu0 0
    %2290 = vmatpush1.bf16.msra.mxu0 %v1886
    %2291 = vmatprep.subr.bf16.mxu0 0
    %2292 = vmatpush1.bf16.msra.mxu0 %v1887
    %2293 = vmatprep.subr.bf16.mxu0 0
    %2294 = vmatpush1.bf16.msra.mxu0 %v1888
    %2295 = vmatprep.subr.bf16.mxu0 0
    %2296 = vmatpush1.bf16.msra.mxu0 %v1889
    %2297 = vmatprep.subr.bf16.mxu0 0
    %2298 = vmatpush1.bf16.msra.mxu0 %v1890
    %2299 = vmatprep.subr.bf16.mxu0 0
    %2300 = vmatpush1.bf16.msra.mxu0 %v1891
    %2301 = vmatprep.subr.bf16.mxu0 0
    %2302 = vmatpush1.bf16.msra.mxu0 %v1892
    %2303 = vmatprep.subr.bf16.mxu0 0
    %2304 = vmatpush1.bf16.msra.mxu0 %v1893
    %2305 = vmatprep.subr.bf16.mxu0 0
    %2306 = vmatpush1.bf16.msra.mxu0 %v1894
    %2307 = vmatprep.subr.bf16.mxu0 0
    %2308 = vmatpush1.bf16.msra.mxu0 %v1895
    %2309 = vmatprep.subr.bf16.mxu0 0
    %2310 = vmatpush1.bf16.msra.mxu0 %v1896
    %2311 = vmatprep.subr.bf16.mxu0 0
    %2312 = vmatpush1.bf16.msra.mxu0 %v1897
    %2313 = vmatprep.subr.bf16.mxu0 0
    %2314 = vmatpush1.bf16.msra.mxu0 %v1898
    %2315 = vmatprep.mubr.bf16.mxu0 %v1254
    %2316 = vmatmul.mubr.bf16.gmra.mrb[0].mxu0 %v1240
    %v2317 = vpop.f32.mrb[0].mxu0
    %v2318 = vadd.f32 %v2278, %v2317
    %v2319 = vpop.f32.mrb[0].mxu0
    %v2320 = vpop.f32.mrb[0].mxu0
    %v2321 = vpop.f32.mrb[0].mxu0
    %2322 = vdwg.mxu0
    %2323 = vmatprep.subr.bf16.mxu0 0
    %2324 = vmatpush1.bf16.msra.mxu0 %v1899
    %2325 = vmatprep.subr.bf16.mxu0 0
    %2326 = vmatpush1.bf16.msra.mxu0 %v1900
    %2327 = vmatprep.subr.bf16.mxu0 0
    %2328 = vmatpush1.bf16.msra.mxu0 %v1901
    %2329 = vmatprep.subr.bf16.mxu0 0
    %2330 = vmatpush1.bf16.msra.mxu0 %v1902
    %2331 = vmatprep.subr.bf16.mxu0 0
    %2332 = vmatpush1.bf16.msra.mxu0 %v1903
    %2333 = vmatprep.subr.bf16.mxu0 0
    %2334 = vmatpush1.bf16.msra.mxu0 %v1904
    %2335 = vmatprep.subr.bf16.mxu0 0
    %2336 = vmatpush1.bf16.msra.mxu0 %v1905
    %2337 = vmatprep.subr.bf16.mxu0 0
    %2338 = vmatpush1.bf16.msra.mxu0 %v1906
    %2339 = vmatprep.subr.bf16.mxu0 0
    %2340 = vmatpush1.bf16.msra.mxu0 %v1907
    %2341 = vmatprep.subr.bf16.mxu0 0
    %2342 = vmatpush1.bf16.msra.mxu0 %v1908
    %2343 = vmatprep.subr.bf16.mxu0 0
    %2344 = vmatpush1.bf16.msra.mxu0 %v1909
    %2345 = vmatprep.subr.bf16.mxu0 0
    %2346 = vmatpush1.bf16.msra.mxu0 %v1910
    %2347 = vmatprep.subr.bf16.mxu0 0
    %2348 = vmatpush1.bf16.msra.mxu0 %v1911
    %2349 = vmatprep.subr.bf16.mxu0 0
    %2350 = vmatpush1.bf16.msra.mxu0 %v1912
    %2351 = vmatprep.subr.bf16.mxu0 0
    %2352 = vmatpush1.bf16.msra.mxu0 %v1913
    %2353 = vmatprep.subr.bf16.mxu0 0
    %2354 = vmatpush1.bf16.msra.mxu0 %v1914
    %2355 = vmatprep.mubr.bf16.mxu0 %v1258
    %2356 = vmatmul.mubr.bf16.gmra.mrb[0].mxu0 %v1256
    %v2357 = vpop.f32.mrb[0].mxu0
    %v2358 = vadd.f32 %v2318, %v2357
    %v2359 = vpop.f32.mrb[0].mxu0
    %v2360 = vpop.f32.mrb[0].mxu0
    %v2361 = vpop.f32.mrb[0].mxu0
    %2362 = vdwg.mxu0
    %vm2363 = vcmp.ge.f32.partialorder %v2358, 0.0
    %v2364 = vmul.f32 %v2358, 0.01
    %v2365 = vsel %vm2363, %v2358, %v2364
    %v2366 = vpack.c.bf16 %v2365, %v2365
    %v2367 = vld [vmem:[%s3] sm:$0xf]
    %v2368 = vld [vmem:[%s3 + $0x4] sm:$0xf]
    %v2369 = vld [vmem:[%s3 + $0x8] sm:$0xf]
    %v2370 = vld [vmem:[%s3 + $0xc] sm:$0xf]
    %v2371 = vld [vmem:[%s3 + $0x10] sm:$0xf]
    %v2372 = vld [vmem:[%s3 + $0x14] sm:$0xf]
    %v2373 = vld [vmem:[%s3 + $0x18] sm:$0xf]
    %v2374 = vld [vmem:[%s3 + $0x1c] sm:$0xf]
    %v2375 = vld [vmem:[%s3 + $0x20] sm:$0xf]
    %v2376 = vld [vmem:[%s3 + $0x24] sm:$0xf]
    %v2377 = vld [vmem:[%s3 + $0x28] sm:$0xf]
    %v2378 = vld [vmem:[%s3 + $0x2c] sm:$0xf]
    %v2379 = vld [vmem:[%s3 + $0x30] sm:$0xf]
    %v2380 = vld [vmem:[%s3 + $0x34] sm:$0xf]
    %v2381 = vld [vmem:[%s3 + $0x38] sm:$0xf]
    %v2382 = vld [vmem:[%s3 + $0x3c] sm:$0xf]
    %v2383 = vld [vmem:[%s4 + $0x2] sm:$0x1]
    %v2385 = vlaneseq
    %v2386 = vshrl.u32 %v2385, 7
    %v2387 = vsub.s32 0, %v2386
    %v2388 = vrot.slane %v2383, %v2387
    %v2406 = vunpack.c.l.b16 %v2367
    %v2407 = vunpack.c.l.b16 %v2368
    %v2408 = vunpack.c.l.b16 %v2369
    %v2409 = vunpack.c.l.b16 %v2370
    %v2410 = vunpack.c.l.b16 %v2371
    %v2411 = vunpack.c.l.b16 %v2372
    %v2412 = vunpack.c.l.b16 %v2373
    %v2413 = vunpack.c.l.b16 %v2374
    %v2414 = vunpack.c.l.b16 %v2375
    %v2415 = vunpack.c.l.b16 %v2376
    %v2416 = vunpack.c.l.b16 %v2377
    %v2417 = vunpack.c.l.b16 %v2378
    %v2418 = vunpack.c.l.b16 %v2379
    %v2419 = vunpack.c.l.b16 %v2380
    %v2420 = vunpack.c.l.b16 %v2381
    %v2421 = vunpack.c.l.b16 %v2382
    %v2422 = vpack.c.b16 %v2407, %v2406
    %v2423 = vpack.c.b16 %v2409, %v2408
    %v2424 = vpack.c.b16 %v2411, %v2410
    %v2425 = vpack.c.b16 %v2413, %v2412
    %v2426 = vpack.c.b16 %v2415, %v2414
    %v2427 = vpack.c.b16 %v2417, %v2416
    %v2428 = vpack.c.b16 %v2419, %v2418
    %v2429 = vpack.c.b16 %v2421, %v2420
    %2438 = vmatprep.subr.bf16.mxu0 0
    %2439 = vmatpush1.bf16.msra.mxu0 %v2422
    %2440 = vmatprep.subr.bf16.mxu0 0
    %2441 = vmatpush1.bf16.msra.mxu0 %v2423
    %2442 = vmatprep.subr.bf16.mxu0 0
    %2443 = vmatpush1.bf16.msra.mxu0 %v2424
    %2444 = vmatprep.subr.bf16.mxu0 0
    %2445 = vmatpush1.bf16.msra.mxu0 %v2425
    %2446 = vmatprep.subr.bf16.mxu0 0
    %2447 = vmatpush1.bf16.msra.mxu0 %v2426
    %2448 = vmatprep.subr.bf16.mxu0 0
    %2449 = vmatpush1.bf16.msra.mxu0 %v2427
    %2450 = vmatprep.subr.bf16.mxu0 0
    %2451 = vmatpush1.bf16.msra.mxu0 %v2428
    %2452 = vmatprep.subr.bf16.mxu0 0
    %2453 = vmatpush1.bf16.msra.mxu0 %v2429
    %2454 = vmatprep.subr.bf16.mxu0 0
    %2455 = vmatpush1.bf16.msra.mxu0 0
    %2456 = vmatprep.subr.bf16.mxu0 0
    %2457 = vmatpush1.bf16.msra.mxu0 0
    %2458 = vmatprep.subr.bf16.mxu0 0
    %2459 = vmatpush1.bf16.msra.mxu0 0
    %2460 = vmatprep.subr.bf16.mxu0 0
    %2461 = vmatpush1.bf16.msra.mxu0 0
    %2462 = vmatprep.subr.bf16.mxu0 0
    %2463 = vmatpush1.bf16.msra.mxu0 0
    %2464 = vmatprep.subr.bf16.mxu0 0
    %2465 = vmatpush1.bf16.msra.mxu0 0
    %2466 = vmatprep.subr.bf16.mxu0 0
    %2467 = vmatpush1.bf16.msra.mxu0 0
    %2468 = vmatprep.subr.bf16.mxu0 0
    %2469 = vmatpush1.bf16.msra.mxu0 0
    %2470 = vmatprep.mubr.bf16.mxu0 0
    %2471 = vmatmul.mubr.bf16.gmra.mrb[0].mxu0 %v2366
    %v2472 = vpop.f32.mrb[0].mxu0
    %v2473 = vadd.f32 %v2388, %v2472
    %v2474 = vpop.f32.mrb[0].mxu0
    %v2475 = vpop.f32.mrb[0].mxu0
    %v2476 = vpop.f32.mrb[0].mxu0
    %2477 = vdwg.mxu0
    %vm2478 = vcmp.ge.f32.partialorder %v2473, 0.0
    %v2479 = vmul.f32 %v2473, 0.01
    %v2480 = vsel %vm2478, %v2473, %v2479
    %vm2481 = vcmask 517120
    %2482 = vst.msk [vmem:[#allocation6] sm:$0x3] %vm2481, %v2480
    // Predicated region
    $region26: #{cnn_for_fcn_grad_forward.1} parent=1 // pred_check
      _
    $region27: #{cnn_for_fcn_grad_forward.1} parent=1 // pred_check_branch
      %2484 = sbr.rel (0) target = $region29
    $region28: #{cnn_for_fcn_grad_forward.1} parent=1 // pred_region
      %s2486 = ssub.s32 32, 32
      %2487 = vsyncadd [#allocation5], %s2486
      %s2489 = sshll.u32 [#allocation6], 4
      %s2490 = int_to_ptr.vmem [resolvable:$true] %s2489
      %2492 = dma.vmem_to_hbm [thread:$0]  %s2490, 32, %s5, [#allocation5]
    $region29: #{cnn_for_fcn_grad_forward.1} parent=1 // pred_fallthru
      _
    // Predicated region
    $region30: #{cnn_for_fcn_grad_forward.1} parent=1 // pred_check
      _
    $region31: #{cnn_for_fcn_grad_forward.1} parent=1 // pred_check_branch
      %2494 = sbr.rel (0) target = $region33
    $region32: #{cnn_for_fcn_grad_forward.1} parent=1 // pred_region
      %2495 = dma.done [#allocation5], 32
    $region33: #{cnn_for_fcn_grad_forward.1} parent=1 // pred_fallthru
      _
    %2496 = vsyncpa [#allocation4], 1
    %2497 = vsyncpa [#allocation5], 1

</llo_original>
